<compile_context>
chip_gen: v5e
topology: v5e:2x2
jax: 0.10.0
libtpu: 0.0.40
codegen_flags: <defaults>
</compile_context>

<pallas_src>
import functools

import jax
import jax.numpy as jnp
from jax.experimental import pallas as pl
from jax.experimental.pallas import tpu as pltpu

KERNEL_SIZE = 5
PADDING = 2
LEAK = 0.1
BN_EPS = 1e-5
_LANES = 128


def _round_up(x, m):
    return -(-x // m) * m


def _pick_row_tile(h, w_padded, max_lanes=2048):
    """Largest row-tile TR dividing H with TR*w_padded a multiple of 128 lanes
    (keeps the output BlockSpec lane-dense).  Falls back to the full image,
    which is always legal because the block then spans the full flattened
    spatial dimension."""
    best = h
    for tr in range(1, h):
        if h % tr == 0 and (tr * w_padded) % _LANES == 0 and tr * w_padded <= max_lanes:
            best = tr
    return best


def _enc_block_kernel(x_ref, w_ref, c_ref, o_ref, *, cin, cout, w_padded,
                      tile_rows, row_tiles, k):
    """One (batch, row-tile) step of fused conv + LeakyReLU + BatchNorm.

    x_ref : (1, cin, S) bf16   padded image, spatial flattened; its block
            index depends only on the batch axis, so it stays resident in
            VMEM across the row-tile axis.
    w_ref : (k*k, cout, cin) bf16   one (cout, cin) matrix per conv tap.
    c_ref : (cout, 3) f32   columns = [conv bias, bn scale, bn shift].
    o_ref : (1, cout, tile_rows * w_padded) f32   lane-dense output tile.
    """
    lanes = tile_rows * w_padded
    if row_tiles == 1:
        base = 0                                   # fully static slice starts
    else:
        # tile_rows * w_padded is a multiple of 128 by construction.
        base = pl.multiple_of(pl.program_id(1) * lanes, _LANES)

    acc = jnp.zeros((cout, lanes), jnp.float32)
    for kh in range(k):
        for kw in range(k):
            start = base + kh * w_padded + kw
            x_tap = x_ref[0, :, pl.ds(start, lanes)]      # (cin, lanes) bf16
            w_tap = w_ref[kh * k + kw]                    # (cout, cin) bf16
            acc += jnp.dot(w_tap, x_tap, preferred_element_type=jnp.float32)

    bias = c_ref[:, 0:1]
    scale = c_ref[:, 1:2]
    shift = c_ref[:, 2:3]
    y = acc + bias                                        # conv bias
    y = jnp.where(y >= 0.0, y, LEAK * y)                  # LeakyReLU(0.1)
    # TODO(synk): Dropout2d is identity in eval mode; training-mode per-(N,C)
    # channel dropout is not implemented here.
    o_ref[0] = (y * scale + shift).astype(o_ref.dtype)    # folded BatchNorm


def encoding_block_forward(x_nchw, conv_w, conv_b, bn_gamma, bn_beta,
                           bn_mean, bn_var):
    """x_nchw: (N, Cin, H, W) float32.  Returns (N, Cout, H, W) float32."""
    n, cin, h, w = x_nchw.shape
    cout = conv_w.shape[0]
    k = KERNEL_SIZE

    hp = h + 2 * PADDING
    wp = w + 2 * PADDING
    cin_p = _round_up(cin, 8)          # pad channels for clean sublane layout

    # Padded, channel-major, spatially-flattened bf16 input.  Extra tail zeros
    # let the last tap's slice run past the final image row harmlessly.
    s_flat = _round_up(hp * wp + (k - 1), _LANES)
    xb = x_nchw.astype(jnp.bfloat16)
    xb = jnp.pad(xb, ((0, 0), (0, cin_p - cin),
                      (PADDING, PADDING), (PADDING, PADDING)))
    xb = xb.reshape(n, cin_p, hp * wp)
    xb = jnp.pad(xb, ((0, 0), (0, 0), (0, s_flat - hp * wp)))

    # (k*k, cout, cin_p) per-tap weight matrices, bf16.
    wt = jnp.pad(conv_w, ((0, 0), (0, cin_p - cin), (0, 0), (0, 0)))
    wt = jnp.transpose(wt, (2, 3, 0, 1)).reshape(k * k, cout, cin_p)
    wt = wt.astype(jnp.bfloat16)

    # Fold BatchNorm (eval) + conv bias into one (cout, 3) f32 constant.
    inv_std = 1.0 / jnp.sqrt(bn_var + BN_EPS)
    scale = bn_gamma * inv_std
    shift = bn_beta - bn_mean * scale
    consts = jnp.stack([conv_b, scale, shift], axis=1).astype(jnp.float32)

    tile_rows = _pick_row_tile(h, wp)
    row_tiles = h // tile_rows
    lanes = tile_rows * wp

    kernel = functools.partial(
        _enc_block_kernel, cin=cin_p, cout=cout, w_padded=wp,
        tile_rows=tile_rows, row_tiles=row_tiles, k=k)

    out_wide = pl.pallas_call(
        kernel,
        out_shape=jax.ShapeDtypeStruct((n, cout, h * wp), jnp.float32),
        grid_spec=pltpu.PrefetchScalarGridSpec(
            num_scalar_prefetch=0,
            grid=(n, row_tiles),
            in_specs=[
                # Whole padded image per batch element; index only depends on
                # the batch axis -> resident across the row-tile axis.
                pl.BlockSpec((1, cin_p, s_flat), lambda b, r: (b, 0, 0)),
                # Grid-invariant weights / packed constants (a few KB).
                pl.BlockSpec((k * k, cout, cin_p), lambda b, r: (0, 0, 0)),
                pl.BlockSpec((cout, 3), lambda b, r: (0, 0)),
            ],
            out_specs=pl.BlockSpec((1, cout, lanes), lambda b, r: (b, 0, r)),
        ),
        compiler_params=pltpu.CompilerParams(
            dimension_semantics=("parallel", "arbitrary"),
            vmem_limit_bytes=32 * 1024 * 1024),
    )(xb, wt, consts)

    # Drop the width-padding columns; output is already NCHW.
    return out_wide.reshape(n, cout, h, wp)[..., :w]


def _reference_forward(x_nchw, conv_w, conv_b, bn_gamma, bn_beta, bn_mean, bn_var):
    """Pure-JAX reference (correctness check only)."""
    y = jax.lax.conv_general_dilated(
        x_nchw, conv_w, window_strides=(1, 1),
        padding=((PADDING, PADDING), (PADDING, PADDING)),
        dimension_numbers=("NCHW", "OIHW", "NCHW"))
    y = y + conv_b[None, :, None, None]
    y = jnp.where(y >= 0.0, y, LEAK * y)
    inv_std = 1.0 / jnp.sqrt(bn_var + BN_EPS)
    scale = bn_gamma * inv_std
    shift = bn_beta - bn_mean * scale
    return y * scale[None, :, None, None] + shift[None, :, None, None]


if __name__ == "__main__":
    # Small shapes consistent with the module: batch=2, in_chans=4,
    # out_chans=8, spatial 16x16.
    N, CIN, COUT, H, W = 2, 4, 8, 16, 16

    key = jax.random.PRNGKey(0)
    kx, kw_, kb, kg, kbt, km, kv = jax.random.split(key, 7)

    x = jax.random.normal(kx, (N, CIN, H, W), dtype=jnp.float32)
    conv_w = 0.05 * jax.random.normal(
        kw_, (COUT, CIN, KERNEL_SIZE, KERNEL_SIZE), dtype=jnp.float32)
    conv_b = 0.1 * jax.random.normal(kb, (COUT,), dtype=jnp.float32)
    bn_gamma = 1.0 + 0.1 * jax.random.normal(kg, (COUT,), dtype=jnp.float32)
    bn_beta = 0.1 * jax.random.normal(kbt, (COUT,), dtype=jnp.float32)
    bn_mean = 0.05 * jax.random.normal(km, (COUT,), dtype=jnp.float32)
    bn_var = jnp.abs(1.0 + 0.1 * jax.random.normal(kv, (COUT,), dtype=jnp.float32))

    out = encoding_block_forward(x, conv_w, conv_b, bn_gamma, bn_beta,
                                 bn_mean, bn_var)
    out = jax.block_until_ready(out)

    # Reference at matched (bf16-rounded) operand precision; both sides
    # accumulate in f32, so only summation order differs.
    xq = x.astype(jnp.bfloat16).astype(jnp.float32)
    wq = conv_w.astype(jnp.bfloat16).astype(jnp.float32)
    ref = _reference_forward(xq, wq, conv_b, bn_gamma, bn_beta, bn_mean, bn_var)

    assert out.shape == (N, COUT, H, W)
    err = float(jnp.max(jnp.abs(out - ref)))
    assert jnp.allclose(out, ref, atol=2e-3, rtol=2e-3), err

    print("KERNEL_OK")
</pallas_src>

<mosaic_0001>
module attributes {stable_mosaic.version = 11 : i64} {
  func.func @_enc_block_kernel(%arg0: i32, %arg1: i32, %arg2: memref<1x8x512xbf16, #tpu.memory_space<vmem>>, %arg3: memref<25x8x8xbf16, #tpu.memory_space<vmem>>, %arg4: memref<8x3xf32, #tpu.memory_space<vmem>>, %arg5: memref<1x8x320xf32, #tpu.memory_space<vmem>>) attributes {dimension_semantics = [#tpu.dimension_semantics<parallel>, #tpu.dimension_semantics<arbitrary>], iteration_bounds = array<i64: 2, 1>, scalar_prefetch = 0 : i64, scratch_operands = 0 : i64, tpu.core_type = #tpu.core_type<tc>, window_params = [{transform_indices = @transform_0, window_bounds = array<i64: 1, 8, 512>}, {pipeline_mode = #tpu.pipeline_mode<synchronous>, transform_indices = @transform_1, window_bounds = array<i64: 25, 8, 8>}, {pipeline_mode = #tpu.pipeline_mode<synchronous>, transform_indices = @transform_2, window_bounds = array<i64: 8, 3>}, {transform_indices = @transform_3, window_bounds = array<i64: 1, 8, 320>}]} {
    %cst = arith.constant 0.000000e+00 : f32
    %0 = vector.broadcast %cst : f32 to vector<8x320xf32>
    %c0 = arith.constant 0 : index
    %c0_0 = arith.constant 0 : index
    %c0_1 = arith.constant 0 : index
    %1 = vector.load %arg2[%c0, %c0_0, %c0_1] : memref<1x8x512xbf16, #tpu.memory_space<vmem>>, vector<1x8x320xbf16>
    %2 = vector.shape_cast %1 : vector<1x8x320xbf16> to vector<8x320xbf16>
    %c0_2 = arith.constant 0 : index
    %c0_3 = arith.constant 0 : index
    %c0_4 = arith.constant 0 : index
    %3 = vector.load %arg3[%c0_2, %c0_3, %c0_4] : memref<25x8x8xbf16, #tpu.memory_space<vmem>>, vector<1x8x8xbf16>
    %4 = vector.shape_cast %3 : vector<1x8x8xbf16> to vector<8x8xbf16>
    %cst_5 = arith.constant dense<0.000000e+00> : vector<8x320xf32>
    %5 = tpu.matmul %4, %2, %cst_5 {dimension_numbers = #tpu.dot_dimension_numbers<[1], [0], [0], [1], [0, 0, 1, 1], [], []>} : vector<8x8xbf16>, vector<8x320xbf16>, vector<8x320xf32> -> vector<8x320xf32>
    %6 = arith.addf %0, %5 : vector<8x320xf32>
    %c0_6 = arith.constant 0 : index
    %c0_7 = arith.constant 0 : index
    %c1 = arith.constant 1 : index
    %7 = vector.load %arg2[%c0_6, %c0_7, %c1] : memref<1x8x512xbf16, #tpu.memory_space<vmem>>, vector<1x8x320xbf16>
    %8 = vector.shape_cast %7 : vector<1x8x320xbf16> to vector<8x320xbf16>
    %c1_8 = arith.constant 1 : index
    %c0_9 = arith.constant 0 : index
    %c0_10 = arith.constant 0 : index
    %9 = vector.load %arg3[%c1_8, %c0_9, %c0_10] : memref<25x8x8xbf16, #tpu.memory_space<vmem>>, vector<1x8x8xbf16>
    %10 = vector.shape_cast %9 : vector<1x8x8xbf16> to vector<8x8xbf16>
    %cst_11 = arith.constant dense<0.000000e+00> : vector<8x320xf32>
    %11 = tpu.matmul %10, %8, %cst_11 {dimension_numbers = #tpu.dot_dimension_numbers<[1], [0], [0], [1], [0, 0, 1, 1], [], []>} : vector<8x8xbf16>, vector<8x320xbf16>, vector<8x320xf32> -> vector<8x320xf32>
    %12 = arith.addf %6, %11 : vector<8x320xf32>
    %c0_12 = arith.constant 0 : index
    %c0_13 = arith.constant 0 : index
    %c2 = arith.constant 2 : index
    %13 = vector.load %arg2[%c0_12, %c0_13, %c2] : memref<1x8x512xbf16, #tpu.memory_space<vmem>>, vector<1x8x320xbf16>
    %14 = vector.shape_cast %13 : vector<1x8x320xbf16> to vector<8x320xbf16>
    %c2_14 = arith.constant 2 : index
    %c0_15 = arith.constant 0 : index
    %c0_16 = arith.constant 0 : index
    %15 = vector.load %arg3[%c2_14, %c0_15, %c0_16] : memref<25x8x8xbf16, #tpu.memory_space<vmem>>, vector<1x8x8xbf16>
    %16 = vector.shape_cast %15 : vector<1x8x8xbf16> to vector<8x8xbf16>
    %cst_17 = arith.constant dense<0.000000e+00> : vector<8x320xf32>
    %17 = tpu.matmul %16, %14, %cst_17 {dimension_numbers = #tpu.dot_dimension_numbers<[1], [0], [0], [1], [0, 0, 1, 1], [], []>} : vector<8x8xbf16>, vector<8x320xbf16>, vector<8x320xf32> -> vector<8x320xf32>
    %18 = arith.addf %12, %17 : vector<8x320xf32>
    %c0_18 = arith.constant 0 : index
    %c0_19 = arith.constant 0 : index
    %c3 = arith.constant 3 : index
    %19 = vector.load %arg2[%c0_18, %c0_19, %c3] : memref<1x8x512xbf16, #tpu.memory_space<vmem>>, vector<1x8x320xbf16>
    %20 = vector.shape_cast %19 : vector<1x8x320xbf16> to vector<8x320xbf16>
    %c3_20 = arith.constant 3 : index
    %c0_21 = arith.constant 0 : index
    %c0_22 = arith.constant 0 : index
    %21 = vector.load %arg3[%c3_20, %c0_21, %c0_22] : memref<25x8x8xbf16, #tpu.memory_space<vmem>>, vector<1x8x8xbf16>
    %22 = vector.shape_cast %21 : vector<1x8x8xbf16> to vector<8x8xbf16>
    %cst_23 = arith.constant dense<0.000000e+00> : vector<8x320xf32>
    %23 = tpu.matmul %22, %20, %cst_23 {dimension_numbers = #tpu.dot_dimension_numbers<[1], [0], [0], [1], [0, 0, 1, 1], [], []>} : vector<8x8xbf16>, vector<8x320xbf16>, vector<8x320xf32> -> vector<8x320xf32>
    %24 = arith.addf %18, %23 : vector<8x320xf32>
    %c0_24 = arith.constant 0 : index
    %c0_25 = arith.constant 0 : index
    %c4 = arith.constant 4 : index
    %25 = vector.load %arg2[%c0_24, %c0_25, %c4] : memref<1x8x512xbf16, #tpu.memory_space<vmem>>, vector<1x8x320xbf16>
    %26 = vector.shape_cast %25 : vector<1x8x320xbf16> to vector<8x320xbf16>
    %c4_26 = arith.constant 4 : index
    %c0_27 = arith.constant 0 : index
    %c0_28 = arith.constant 0 : index
    %27 = vector.load %arg3[%c4_26, %c0_27, %c0_28] : memref<25x8x8xbf16, #tpu.memory_space<vmem>>, vector<1x8x8xbf16>
    %28 = vector.shape_cast %27 : vector<1x8x8xbf16> to vector<8x8xbf16>
    %cst_29 = arith.constant dense<0.000000e+00> : vector<8x320xf32>
    %29 = tpu.matmul %28, %26, %cst_29 {dimension_numbers = #tpu.dot_dimension_numbers<[1], [0], [0], [1], [0, 0, 1, 1], [], []>} : vector<8x8xbf16>, vector<8x320xbf16>, vector<8x320xf32> -> vector<8x320xf32>
    %30 = arith.addf %24, %29 : vector<8x320xf32>
    %c0_30 = arith.constant 0 : index
    %c0_31 = arith.constant 0 : index
    %c20 = arith.constant 20 : index
    %31 = vector.load %arg2[%c0_30, %c0_31, %c20] : memref<1x8x512xbf16, #tpu.memory_space<vmem>>, vector<1x8x320xbf16>
    %32 = vector.shape_cast %31 : vector<1x8x320xbf16> to vector<8x320xbf16>
    %c5 = arith.constant 5 : index
    %c0_32 = arith.constant 0 : index
    %c0_33 = arith.constant 0 : index
    %33 = vector.load %arg3[%c5, %c0_32, %c0_33] : memref<25x8x8xbf16, #tpu.memory_space<vmem>>, vector<1x8x8xbf16>
    %34 = vector.shape_cast %33 : vector<1x8x8xbf16> to vector<8x8xbf16>
    %cst_34 = arith.constant dense<0.000000e+00> : vector<8x320xf32>
    %35 = tpu.matmul %34, %32, %cst_34 {dimension_numbers = #tpu.dot_dimension_numbers<[1], [0], [0], [1], [0, 0, 1, 1], [], []>} : vector<8x8xbf16>, vector<8x320xbf16>, vector<8x320xf32> -> vector<8x320xf32>
    %36 = arith.addf %30, %35 : vector<8x320xf32>
    %c0_35 = arith.constant 0 : index
    %c0_36 = arith.constant 0 : index
    %c21 = arith.constant 21 : index
    %37 = vector.load %arg2[%c0_35, %c0_36, %c21] : memref<1x8x512xbf16, #tpu.memory_space<vmem>>, vector<1x8x320xbf16>
    %38 = vector.shape_cast %37 : vector<1x8x320xbf16> to vector<8x320xbf16>
    %c6 = arith.constant 6 : index
    %c0_37 = arith.constant 0 : index
    %c0_38 = arith.constant 0 : index
    %39 = vector.load %arg3[%c6, %c0_37, %c0_38] : memref<25x8x8xbf16, #tpu.memory_space<vmem>>, vector<1x8x8xbf16>
    %40 = vector.shape_cast %39 : vector<1x8x8xbf16> to vector<8x8xbf16>
    %cst_39 = arith.constant dense<0.000000e+00> : vector<8x320xf32>
    %41 = tpu.matmul %40, %38, %cst_39 {dimension_numbers = #tpu.dot_dimension_numbers<[1], [0], [0], [1], [0, 0, 1, 1], [], []>} : vector<8x8xbf16>, vector<8x320xbf16>, vector<8x320xf32> -> vector<8x320xf32>
    %42 = arith.addf %36, %41 : vector<8x320xf32>
    %c0_40 = arith.constant 0 : index
    %c0_41 = arith.constant 0 : index
    %c22 = arith.constant 22 : index
    %43 = vector.load %arg2[%c0_40, %c0_41, %c22] : memref<1x8x512xbf16, #tpu.memory_space<vmem>>, vector<1x8x320xbf16>
    %44 = vector.shape_cast %43 : vector<1x8x320xbf16> to vector<8x320xbf16>
    %c7 = arith.constant 7 : index
    %c0_42 = arith.constant 0 : index
    %c0_43 = arith.constant 0 : index
    %45 = vector.load %arg3[%c7, %c0_42, %c0_43] : memref<25x8x8xbf16, #tpu.memory_space<vmem>>, vector<1x8x8xbf16>
    %46 = vector.shape_cast %45 : vector<1x8x8xbf16> to vector<8x8xbf16>
    %cst_44 = arith.constant dense<0.000000e+00> : vector<8x320xf32>
    %47 = tpu.matmul %46, %44, %cst_44 {dimension_numbers = #tpu.dot_dimension_numbers<[1], [0], [0], [1], [0, 0, 1, 1], [], []>} : vector<8x8xbf16>, vector<8x320xbf16>, vector<8x320xf32> -> vector<8x320xf32>
    %48 = arith.addf %42, %47 : vector<8x320xf32>
    %c0_45 = arith.constant 0 : index
    %c0_46 = arith.constant 0 : index
    %c23 = arith.constant 23 : index
    %49 = vector.load %arg2[%c0_45, %c0_46, %c23] : memref<1x8x512xbf16, #tpu.memory_space<vmem>>, vector<1x8x320xbf16>
    %50 = vector.shape_cast %49 : vector<1x8x320xbf16> to vector<8x320xbf16>
    %c8 = arith.constant 8 : index
    %c0_47 = arith.constant 0 : index
    %c0_48 = arith.constant 0 : index
    %51 = vector.load %arg3[%c8, %c0_47, %c0_48] : memref<25x8x8xbf16, #tpu.memory_space<vmem>>, vector<1x8x8xbf16>
    %52 = vector.shape_cast %51 : vector<1x8x8xbf16> to vector<8x8xbf16>
    %cst_49 = arith.constant dense<0.000000e+00> : vector<8x320xf32>
    %53 = tpu.matmul %52, %50, %cst_49 {dimension_numbers = #tpu.dot_dimension_numbers<[1], [0], [0], [1], [0, 0, 1, 1], [], []>} : vector<8x8xbf16>, vector<8x320xbf16>, vector<8x320xf32> -> vector<8x320xf32>
    %54 = arith.addf %48, %53 : vector<8x320xf32>
    %c0_50 = arith.constant 0 : index
    %c0_51 = arith.constant 0 : index
    %c24 = arith.constant 24 : index
    %55 = vector.load %arg2[%c0_50, %c0_51, %c24] : memref<1x8x512xbf16, #tpu.memory_space<vmem>>, vector<1x8x320xbf16>
    %56 = vector.shape_cast %55 : vector<1x8x320xbf16> to vector<8x320xbf16>
    %c9 = arith.constant 9 : index
    %c0_52 = arith.constant 0 : index
    %c0_53 = arith.constant 0 : index
    %57 = vector.load %arg3[%c9, %c0_52, %c0_53] : memref<25x8x8xbf16, #tpu.memory_space<vmem>>, vector<1x8x8xbf16>
    %58 = vector.shape_cast %57 : vector<1x8x8xbf16> to vector<8x8xbf16>
    %cst_54 = arith.constant dense<0.000000e+00> : vector<8x320xf32>
    %59 = tpu.matmul %58, %56, %cst_54 {dimension_numbers = #tpu.dot_dimension_numbers<[1], [0], [0], [1], [0, 0, 1, 1], [], []>} : vector<8x8xbf16>, vector<8x320xbf16>, vector<8x320xf32> -> vector<8x320xf32>
    %60 = arith.addf %54, %59 : vector<8x320xf32>
    %c0_55 = arith.constant 0 : index
    %c0_56 = arith.constant 0 : index
    %c40 = arith.constant 40 : index
    %61 = vector.load %arg2[%c0_55, %c0_56, %c40] : memref<1x8x512xbf16, #tpu.memory_space<vmem>>, vector<1x8x320xbf16>
    %62 = vector.shape_cast %61 : vector<1x8x320xbf16> to vector<8x320xbf16>
    %c10 = arith.constant 10 : index
    %c0_57 = arith.constant 0 : index
    %c0_58 = arith.constant 0 : index
    %63 = vector.load %arg3[%c10, %c0_57, %c0_58] : memref<25x8x8xbf16, #tpu.memory_space<vmem>>, vector<1x8x8xbf16>
    %64 = vector.shape_cast %63 : vector<1x8x8xbf16> to vector<8x8xbf16>
    %cst_59 = arith.constant dense<0.000000e+00> : vector<8x320xf32>
    %65 = tpu.matmul %64, %62, %cst_59 {dimension_numbers = #tpu.dot_dimension_numbers<[1], [0], [0], [1], [0, 0, 1, 1], [], []>} : vector<8x8xbf16>, vector<8x320xbf16>, vector<8x320xf32> -> vector<8x320xf32>
    %66 = arith.addf %60, %65 : vector<8x320xf32>
    %c0_60 = arith.constant 0 : index
    %c0_61 = arith.constant 0 : index
    %c41 = arith.constant 41 : index
    %67 = vector.load %arg2[%c0_60, %c0_61, %c41] : memref<1x8x512xbf16, #tpu.memory_space<vmem>>, vector<1x8x320xbf16>
    %68 = vector.shape_cast %67 : vector<1x8x320xbf16> to vector<8x320xbf16>
    %c11 = arith.constant 11 : index
    %c0_62 = arith.constant 0 : index
    %c0_63 = arith.constant 0 : index
    %69 = vector.load %arg3[%c11, %c0_62, %c0_63] : memref<25x8x8xbf16, #tpu.memory_space<vmem>>, vector<1x8x8xbf16>
    %70 = vector.shape_cast %69 : vector<1x8x8xbf16> to vector<8x8xbf16>
    %cst_64 = arith.constant dense<0.000000e+00> : vector<8x320xf32>
    %71 = tpu.matmul %70, %68, %cst_64 {dimension_numbers = #tpu.dot_dimension_numbers<[1], [0], [0], [1], [0, 0, 1, 1], [], []>} : vector<8x8xbf16>, vector<8x320xbf16>, vector<8x320xf32> -> vector<8x320xf32>
    %72 = arith.addf %66, %71 : vector<8x320xf32>
    %c0_65 = arith.constant 0 : index
    %c0_66 = arith.constant 0 : index
    %c42 = arith.constant 42 : index
    %73 = vector.load %arg2[%c0_65, %c0_66, %c42] : memref<1x8x512xbf16, #tpu.memory_space<vmem>>, vector<1x8x320xbf16>
    %74 = vector.shape_cast %73 : vector<1x8x320xbf16> to vector<8x320xbf16>
    %c12 = arith.constant 12 : index
    %c0_67 = arith.constant 0 : index
    %c0_68 = arith.constant 0 : index
    %75 = vector.load %arg3[%c12, %c0_67, %c0_68] : memref<25x8x8xbf16, #tpu.memory_space<vmem>>, vector<1x8x8xbf16>
    %76 = vector.shape_cast %75 : vector<1x8x8xbf16> to vector<8x8xbf16>
    %cst_69 = arith.constant dense<0.000000e+00> : vector<8x320xf32>
    %77 = tpu.matmul %76, %74, %cst_69 {dimension_numbers = #tpu.dot_dimension_numbers<[1], [0], [0], [1], [0, 0, 1, 1], [], []>} : vector<8x8xbf16>, vector<8x320xbf16>, vector<8x320xf32> -> vector<8x320xf32>
    %78 = arith.addf %72, %77 : vector<8x320xf32>
    %c0_70 = arith.constant 0 : index
    %c0_71 = arith.constant 0 : index
    %c43 = arith.constant 43 : index
    %79 = vector.load %arg2[%c0_70, %c0_71, %c43] : memref<1x8x512xbf16, #tpu.memory_space<vmem>>, vector<1x8x320xbf16>
    %80 = vector.shape_cast %79 : vector<1x8x320xbf16> to vector<8x320xbf16>
    %c13 = arith.constant 13 : index
    %c0_72 = arith.constant 0 : index
    %c0_73 = arith.constant 0 : index
    %81 = vector.load %arg3[%c13, %c0_72, %c0_73] : memref<25x8x8xbf16, #tpu.memory_space<vmem>>, vector<1x8x8xbf16>
    %82 = vector.shape_cast %81 : vector<1x8x8xbf16> to vector<8x8xbf16>
    %cst_74 = arith.constant dense<0.000000e+00> : vector<8x320xf32>
    %83 = tpu.matmul %82, %80, %cst_74 {dimension_numbers = #tpu.dot_dimension_numbers<[1], [0], [0], [1], [0, 0, 1, 1], [], []>} : vector<8x8xbf16>, vector<8x320xbf16>, vector<8x320xf32> -> vector<8x320xf32>
    %84 = arith.addf %78, %83 : vector<8x320xf32>
    %c0_75 = arith.constant 0 : index
    %c0_76 = arith.constant 0 : index
    %c44 = arith.constant 44 : index
    %85 = vector.load %arg2[%c0_75, %c0_76, %c44] : memref<1x8x512xbf16, #tpu.memory_space<vmem>>, vector<1x8x320xbf16>
    %86 = vector.shape_cast %85 : vector<1x8x320xbf16> to vector<8x320xbf16>
    %c14 = arith.constant 14 : index
    %c0_77 = arith.constant 0 : index
    %c0_78 = arith.constant 0 : index
    %87 = vector.load %arg3[%c14, %c0_77, %c0_78] : memref<25x8x8xbf16, #tpu.memory_space<vmem>>, vector<1x8x8xbf16>
    %88 = vector.shape_cast %87 : vector<1x8x8xbf16> to vector<8x8xbf16>
    %cst_79 = arith.constant dense<0.000000e+00> : vector<8x320xf32>
    %89 = tpu.matmul %88, %86, %cst_79 {dimension_numbers = #tpu.dot_dimension_numbers<[1], [0], [0], [1], [0, 0, 1, 1], [], []>} : vector<8x8xbf16>, vector<8x320xbf16>, vector<8x320xf32> -> vector<8x320xf32>
    %90 = arith.addf %84, %89 : vector<8x320xf32>
    %c0_80 = arith.constant 0 : index
    %c0_81 = arith.constant 0 : index
    %c60 = arith.constant 60 : index
    %91 = vector.load %arg2[%c0_80, %c0_81, %c60] : memref<1x8x512xbf16, #tpu.memory_space<vmem>>, vector<1x8x320xbf16>
    %92 = vector.shape_cast %91 : vector<1x8x320xbf16> to vector<8x320xbf16>
    %c15 = arith.constant 15 : index
    %c0_82 = arith.constant 0 : index
    %c0_83 = arith.constant 0 : index
    %93 = vector.load %arg3[%c15, %c0_82, %c0_83] : memref<25x8x8xbf16, #tpu.memory_space<vmem>>, vector<1x8x8xbf16>
    %94 = vector.shape_cast %93 : vector<1x8x8xbf16> to vector<8x8xbf16>
    %cst_84 = arith.constant dense<0.000000e+00> : vector<8x320xf32>
    %95 = tpu.matmul %94, %92, %cst_84 {dimension_numbers = #tpu.dot_dimension_numbers<[1], [0], [0], [1], [0, 0, 1, 1], [], []>} : vector<8x8xbf16>, vector<8x320xbf16>, vector<8x320xf32> -> vector<8x320xf32>
    %96 = arith.addf %90, %95 : vector<8x320xf32>
    %c0_85 = arith.constant 0 : index
    %c0_86 = arith.constant 0 : index
    %c61 = arith.constant 61 : index
    %97 = vector.load %arg2[%c0_85, %c0_86, %c61] : memref<1x8x512xbf16, #tpu.memory_space<vmem>>, vector<1x8x320xbf16>
    %98 = vector.shape_cast %97 : vector<1x8x320xbf16> to vector<8x320xbf16>
    %c16 = arith.constant 16 : index
    %c0_87 = arith.constant 0 : index
    %c0_88 = arith.constant 0 : index
    %99 = vector.load %arg3[%c16, %c0_87, %c0_88] : memref<25x8x8xbf16, #tpu.memory_space<vmem>>, vector<1x8x8xbf16>
    %100 = vector.shape_cast %99 : vector<1x8x8xbf16> to vector<8x8xbf16>
    %cst_89 = arith.constant dense<0.000000e+00> : vector<8x320xf32>
    %101 = tpu.matmul %100, %98, %cst_89 {dimension_numbers = #tpu.dot_dimension_numbers<[1], [0], [0], [1], [0, 0, 1, 1], [], []>} : vector<8x8xbf16>, vector<8x320xbf16>, vector<8x320xf32> -> vector<8x320xf32>
    %102 = arith.addf %96, %101 : vector<8x320xf32>
    %c0_90 = arith.constant 0 : index
    %c0_91 = arith.constant 0 : index
    %c62 = arith.constant 62 : index
    %103 = vector.load %arg2[%c0_90, %c0_91, %c62] : memref<1x8x512xbf16, #tpu.memory_space<vmem>>, vector<1x8x320xbf16>
    %104 = vector.shape_cast %103 : vector<1x8x320xbf16> to vector<8x320xbf16>
    %c17 = arith.constant 17 : index
    %c0_92 = arith.constant 0 : index
    %c0_93 = arith.constant 0 : index
    %105 = vector.load %arg3[%c17, %c0_92, %c0_93] : memref<25x8x8xbf16, #tpu.memory_space<vmem>>, vector<1x8x8xbf16>
    %106 = vector.shape_cast %105 : vector<1x8x8xbf16> to vector<8x8xbf16>
    %cst_94 = arith.constant dense<0.000000e+00> : vector<8x320xf32>
    %107 = tpu.matmul %106, %104, %cst_94 {dimension_numbers = #tpu.dot_dimension_numbers<[1], [0], [0], [1], [0, 0, 1, 1], [], []>} : vector<8x8xbf16>, vector<8x320xbf16>, vector<8x320xf32> -> vector<8x320xf32>
    %108 = arith.addf %102, %107 : vector<8x320xf32>
    %c0_95 = arith.constant 0 : index
    %c0_96 = arith.constant 0 : index
    %c63 = arith.constant 63 : index
    %109 = vector.load %arg2[%c0_95, %c0_96, %c63] : memref<1x8x512xbf16, #tpu.memory_space<vmem>>, vector<1x8x320xbf16>
    %110 = vector.shape_cast %109 : vector<1x8x320xbf16> to vector<8x320xbf16>
    %c18 = arith.constant 18 : index
    %c0_97 = arith.constant 0 : index
    %c0_98 = arith.constant 0 : index
    %111 = vector.load %arg3[%c18, %c0_97, %c0_98] : memref<25x8x8xbf16, #tpu.memory_space<vmem>>, vector<1x8x8xbf16>
    %112 = vector.shape_cast %111 : vector<1x8x8xbf16> to vector<8x8xbf16>
    %cst_99 = arith.constant dense<0.000000e+00> : vector<8x320xf32>
    %113 = tpu.matmul %112, %110, %cst_99 {dimension_numbers = #tpu.dot_dimension_numbers<[1], [0], [0], [1], [0, 0, 1, 1], [], []>} : vector<8x8xbf16>, vector<8x320xbf16>, vector<8x320xf32> -> vector<8x320xf32>
    %114 = arith.addf %108, %113 : vector<8x320xf32>
    %c0_100 = arith.constant 0 : index
    %c0_101 = arith.constant 0 : index
    %c64 = arith.constant 64 : index
    %115 = vector.load %arg2[%c0_100, %c0_101, %c64] : memref<1x8x512xbf16, #tpu.memory_space<vmem>>, vector<1x8x320xbf16>
    %116 = vector.shape_cast %115 : vector<1x8x320xbf16> to vector<8x320xbf16>
    %c19 = arith.constant 19 : index
    %c0_102 = arith.constant 0 : index
    %c0_103 = arith.constant 0 : index
    %117 = vector.load %arg3[%c19, %c0_102, %c0_103] : memref<25x8x8xbf16, #tpu.memory_space<vmem>>, vector<1x8x8xbf16>
    %118 = vector.shape_cast %117 : vector<1x8x8xbf16> to vector<8x8xbf16>
    %cst_104 = arith.constant dense<0.000000e+00> : vector<8x320xf32>
    %119 = tpu.matmul %118, %116, %cst_104 {dimension_numbers = #tpu.dot_dimension_numbers<[1], [0], [0], [1], [0, 0, 1, 1], [], []>} : vector<8x8xbf16>, vector<8x320xbf16>, vector<8x320xf32> -> vector<8x320xf32>
    %120 = arith.addf %114, %119 : vector<8x320xf32>
    %c0_105 = arith.constant 0 : index
    %c0_106 = arith.constant 0 : index
    %c80 = arith.constant 80 : index
    %121 = vector.load %arg2[%c0_105, %c0_106, %c80] : memref<1x8x512xbf16, #tpu.memory_space<vmem>>, vector<1x8x320xbf16>
    %122 = vector.shape_cast %121 : vector<1x8x320xbf16> to vector<8x320xbf16>
    %c20_107 = arith.constant 20 : index
    %c0_108 = arith.constant 0 : index
    %c0_109 = arith.constant 0 : index
    %123 = vector.load %arg3[%c20_107, %c0_108, %c0_109] : memref<25x8x8xbf16, #tpu.memory_space<vmem>>, vector<1x8x8xbf16>
    %124 = vector.shape_cast %123 : vector<1x8x8xbf16> to vector<8x8xbf16>
    %cst_110 = arith.constant dense<0.000000e+00> : vector<8x320xf32>
    %125 = tpu.matmul %124, %122, %cst_110 {dimension_numbers = #tpu.dot_dimension_numbers<[1], [0], [0], [1], [0, 0, 1, 1], [], []>} : vector<8x8xbf16>, vector<8x320xbf16>, vector<8x320xf32> -> vector<8x320xf32>
    %126 = arith.addf %120, %125 : vector<8x320xf32>
    %c0_111 = arith.constant 0 : index
    %c0_112 = arith.constant 0 : index
    %c81 = arith.constant 81 : index
    %127 = vector.load %arg2[%c0_111, %c0_112, %c81] : memref<1x8x512xbf16, #tpu.memory_space<vmem>>, vector<1x8x320xbf16>
    %128 = vector.shape_cast %127 : vector<1x8x320xbf16> to vector<8x320xbf16>
    %c21_113 = arith.constant 21 : index
    %c0_114 = arith.constant 0 : index
    %c0_115 = arith.constant 0 : index
    %129 = vector.load %arg3[%c21_113, %c0_114, %c0_115] : memref<25x8x8xbf16, #tpu.memory_space<vmem>>, vector<1x8x8xbf16>
    %130 = vector.shape_cast %129 : vector<1x8x8xbf16> to vector<8x8xbf16>
    %cst_116 = arith.constant dense<0.000000e+00> : vector<8x320xf32>
    %131 = tpu.matmul %130, %128, %cst_116 {dimension_numbers = #tpu.dot_dimension_numbers<[1], [0], [0], [1], [0, 0, 1, 1], [], []>} : vector<8x8xbf16>, vector<8x320xbf16>, vector<8x320xf32> -> vector<8x320xf32>
    %132 = arith.addf %126, %131 : vector<8x320xf32>
    %c0_117 = arith.constant 0 : index
    %c0_118 = arith.constant 0 : index
    %c82 = arith.constant 82 : index
    %133 = vector.load %arg2[%c0_117, %c0_118, %c82] : memref<1x8x512xbf16, #tpu.memory_space<vmem>>, vector<1x8x320xbf16>
    %134 = vector.shape_cast %133 : vector<1x8x320xbf16> to vector<8x320xbf16>
    %c22_119 = arith.constant 22 : index
    %c0_120 = arith.constant 0 : index
    %c0_121 = arith.constant 0 : index
    %135 = vector.load %arg3[%c22_119, %c0_120, %c0_121] : memref<25x8x8xbf16, #tpu.memory_space<vmem>>, vector<1x8x8xbf16>
    %136 = vector.shape_cast %135 : vector<1x8x8xbf16> to vector<8x8xbf16>
    %cst_122 = arith.constant dense<0.000000e+00> : vector<8x320xf32>
    %137 = tpu.matmul %136, %134, %cst_122 {dimension_numbers = #tpu.dot_dimension_numbers<[1], [0], [0], [1], [0, 0, 1, 1], [], []>} : vector<8x8xbf16>, vector<8x320xbf16>, vector<8x320xf32> -> vector<8x320xf32>
    %138 = arith.addf %132, %137 : vector<8x320xf32>
    %c0_123 = arith.constant 0 : index
    %c0_124 = arith.constant 0 : index
    %c83 = arith.constant 83 : index
    %139 = vector.load %arg2[%c0_123, %c0_124, %c83] : memref<1x8x512xbf16, #tpu.memory_space<vmem>>, vector<1x8x320xbf16>
    %140 = vector.shape_cast %139 : vector<1x8x320xbf16> to vector<8x320xbf16>
    %c23_125 = arith.constant 23 : index
    %c0_126 = arith.constant 0 : index
    %c0_127 = arith.constant 0 : index
    %141 = vector.load %arg3[%c23_125, %c0_126, %c0_127] : memref<25x8x8xbf16, #tpu.memory_space<vmem>>, vector<1x8x8xbf16>
    %142 = vector.shape_cast %141 : vector<1x8x8xbf16> to vector<8x8xbf16>
    %cst_128 = arith.constant dense<0.000000e+00> : vector<8x320xf32>
    %143 = tpu.matmul %142, %140, %cst_128 {dimension_numbers = #tpu.dot_dimension_numbers<[1], [0], [0], [1], [0, 0, 1, 1], [], []>} : vector<8x8xbf16>, vector<8x320xbf16>, vector<8x320xf32> -> vector<8x320xf32>
    %144 = arith.addf %138, %143 : vector<8x320xf32>
    %c0_129 = arith.constant 0 : index
    %c0_130 = arith.constant 0 : index
    %c84 = arith.constant 84 : index
    %145 = vector.load %arg2[%c0_129, %c0_130, %c84] : memref<1x8x512xbf16, #tpu.memory_space<vmem>>, vector<1x8x320xbf16>
    %146 = vector.shape_cast %145 : vector<1x8x320xbf16> to vector<8x320xbf16>
    %c24_131 = arith.constant 24 : index
    %c0_132 = arith.constant 0 : index
    %c0_133 = arith.constant 0 : index
    %147 = vector.load %arg3[%c24_131, %c0_132, %c0_133] : memref<25x8x8xbf16, #tpu.memory_space<vmem>>, vector<1x8x8xbf16>
    %148 = vector.shape_cast %147 : vector<1x8x8xbf16> to vector<8x8xbf16>
    %cst_134 = arith.constant dense<0.000000e+00> : vector<8x320xf32>
    %149 = tpu.matmul %148, %146, %cst_134 {dimension_numbers = #tpu.dot_dimension_numbers<[1], [0], [0], [1], [0, 0, 1, 1], [], []>} : vector<8x8xbf16>, vector<8x320xbf16>, vector<8x320xf32> -> vector<8x320xf32>
    %150 = arith.addf %144, %149 : vector<8x320xf32>
    %c0_135 = arith.constant 0 : index
    %c0_136 = arith.constant 0 : index
    %151 = vector.load %arg4[%c0_135, %c0_136] : memref<8x3xf32, #tpu.memory_space<vmem>>, vector<8x1xf32>
    %c0_137 = arith.constant 0 : index
    %c1_138 = arith.constant 1 : index
    %152 = vector.load %arg4[%c0_137, %c1_138] : memref<8x3xf32, #tpu.memory_space<vmem>>, vector<8x1xf32>
    %c0_139 = arith.constant 0 : index
    %c2_140 = arith.constant 2 : index
    %153 = vector.load %arg4[%c0_139, %c2_140] : memref<8x3xf32, #tpu.memory_space<vmem>>, vector<8x1xf32>
    %154 = vector.broadcast %151 : vector<8x1xf32> to vector<8x320xf32>
    %155 = arith.addf %150, %154 : vector<8x320xf32>
    %cst_141 = arith.constant 0.000000e+00 : f32
    %156 = vector.broadcast %cst_141 : f32 to vector<8x320xf32>
    %157 = arith.cmpf oge, %155, %156 : vector<8x320xf32>
    %cst_142 = arith.constant 1.000000e-01 : f32
    %158 = vector.broadcast %cst_142 : f32 to vector<8x320xf32>
    %159 = arith.mulf %158, %155 : vector<8x320xf32>
    %160 = arith.select %157, %155, %159 : vector<8x320xi1>, vector<8x320xf32>
    %161 = vector.broadcast %152 : vector<8x1xf32> to vector<8x320xf32>
    %162 = arith.mulf %160, %161 : vector<8x320xf32>
    %163 = vector.broadcast %153 : vector<8x1xf32> to vector<8x320xf32>
    %164 = arith.addf %162, %163 : vector<8x320xf32>
    %c0_143 = arith.constant 0 : index
    %c0_144 = arith.constant 0 : index
    %c0_145 = arith.constant 0 : index
    %165 = vector.load %arg5[%c0_143, %c0_144, %c0_145] : memref<1x8x320xf32, #tpu.memory_space<vmem>>, vector<1x8x320xf32>
    %166 = vector.shape_cast %165 : vector<1x8x320xf32> to vector<8x320xf32>
    %167 = vector.shape_cast %164 : vector<8x320xf32> to vector<1x8x320xf32>
    tpu.vector_store %arg5[%c0_143, %c0_144, %c0_145], %167 {strides = array<i32>} : memref<1x8x320xf32, #tpu.memory_space<vmem>>, vector<1x8x320xf32>,
    return
  }
  func.func @transform_0(%arg0: i32, %arg1: i32) -> (i32, i32, i32) {
    %c0_i32 = arith.constant 0 : i32
    %c0_i32_0 = arith.constant 0 : i32
    %c0_i32_1 = arith.constant 0 : i32
    return %arg0, %c0_i32, %c0_i32_0 : i32, i32, i32
  }
  func.func @transform_1(%arg0: i32, %arg1: i32) -> (i32, i32, i32) {
    %c0_i32 = arith.constant 0 : i32
    %c0_i32_0 = arith.constant 0 : i32
    %c0_i32_1 = arith.constant 0 : i32
    %c0_i32_2 = arith.constant 0 : i32
    return %c0_i32, %c0_i32_0, %c0_i32_1 : i32, i32, i32
  }
  func.func @transform_2(%arg0: i32, %arg1: i32) -> (i32, i32) {
    %c0_i32 = arith.constant 0 : i32
    %c0_i32_0 = arith.constant 0 : i32
    %c0_i32_1 = arith.constant 0 : i32
    return %c0_i32, %c0_i32_0 : i32, i32
  }
  func.func @transform_3(%arg0: i32, %arg1: i32) -> (i32, i32, i32) {
    %c0_i32 = arith.constant 0 : i32
    %c0_i32_0 = arith.constant 0 : i32
    return %arg0, %c0_i32, %arg1 : i32, i32, i32
  }
}

</mosaic_0001>

<llo_original>
// kernel: tpu_custom_call.1
$region0: #{tpu_custom_call.1}
  #allocation0 [shape = 'u32[]', space=smem, size = 0x4, offset = 0x4, fixed_abs, tag = 'smem constant byte address 0x4 - core index']
  #allocation1 [shape = 'u32[72,128]{1,0:T(1,128)}', space=vmem, size = 0x9000, scoped, tag = 'internal scratch']
  %s0 = inlined_call_operand.vmem [shape: bf16[2,8,512], index: 0, kind: input, shape index: {}]
  %s1 = inlined_call_operand.vmem [shape: bf16[25,8,8], index: 1, kind: input, shape index: {}]
  %s2 = inlined_call_operand.vmem [shape: f32[8,3], index: 2, kind: input, shape index: {}]
  %s3 = inlined_call_operand.hbm [shape: f32[2,8,320], index: 3, kind: output, shape index: {}]
  %s4 = sld [smem:[#allocation0]]
  $region45: #{tpu_custom_call.1} parent=0
    _
  %s6 = ssub.s32 1, %s4
  %s7 = scalar_select 0, %s6, %s4
  $region1: #{tpu_custom_call.1} parent=0
    #allocation2 [shape = 'u8[24576]{0}', space=vmem, size = 0x6000, scoped, tag = 'output window, operand 0']
    #allocation3 [shape = 's32[2]{0}', space=sflag, size = 0x8, scoped, tag = 'scoped memory for tpu_custom_call.1']
    %8 = vsyncpa [#allocation3], 0
    %s9 = scalar_lea.sflag [#allocation3], 1
    %10 = vsyncpa %s9, 0
    loop: start=0, step=1, limit=4
    $region2: #{tpu_custom_call.1} parent=1 // loop_pre_header
      _
    $region3: #{tpu_custom_call.1} parent=1 // loop_header
      %s12 = sphi 0, %s16
      %p13 = scmp.ge.s32.totalorder %s12, 4
      %s19 = sphi 0, %s31
      %s20 = sphi 0, %s27
      %s21 = sphi 0, %s19
      %s22 = sphi 0, %s20
      %s23 = sphi 0, %s21
      %s24 = sphi 0, %s22
      %s34 = sphi 0, %s36
      %s37 = sphi 0, %s34
      %s38 = sphi 0, %s37
      %s54 = sphi 0, %s38
      %s58 = sphi 0, %s58
      %s60 = sphi 0, %s58
      %s61 = sphi 0, %s60
      %s75 = sphi 0, %s61
      %s79 = sphi 0, %s79
      %s81 = sphi 0, %s79
      %s82 = sphi 0, %s81
      %s96 = sphi 0, %s82
      %s104 = sphi 0, %s106
      %s107 = sphi 0, %s104
      %s108 = sphi 0, %s107
      %s124 = sphi 0, %s108
    $region4: #{tpu_custom_call.1} parent=1 // loop_header_branch
      %15 = sbr.rel (%p13) target = $region8
    $region5: #{tpu_custom_call.1} parent=1 // loop_body
      %s17 = ssub.s32 %s12, 1
      %s18 = ssub.s32 %s12, 2
      %s25 = sadd.s32 1, %s20
      %p26 = scmp.ge.s32.totalorder %s25, 1
      %s27 = scalar_select %p26, 0, %s25
      %s28 = sadd.s32 1, %s19
      %s29 = scalar_select %p26, %s28, %s19
      %p30 = scmp.ge.s32.totalorder %s29, 2
      %s31 = scalar_select %p30, 0, %s29
      %s32 = ssub.s32 %s19, %s31
      %p33 = scmp.eq.s32.totalorder %s32, 0
      %s35 = sadd.s32 %s34, 1
      %s36 = scalar_select %p33, %s34, %s35
      %p39 = pneg %p33
      %p40 = scmp.eq.s32.totalorder %s12, 1
      %p41 = por %p39, %p40
      %p42 = scmp.ne.s32.totalorder %s34, %s37
      %p43 = scmp.eq.s32.totalorder %s12, 0
      %p44 = por %p42, %p43
      %p45 = scmp.ne.s32.totalorder %s34, %s37
      %p46 = scmp.eq.s32.totalorder %s17, 1
      %p47 = por %p45, %p46
      %p48 = scmp.ne.s32.totalorder %s37, %s38
      %p49 = scmp.eq.s32.totalorder %s17, 0
      %p50 = por %p48, %p49
      %p51 = scmp.ne.s32.totalorder %s37, %s38
      %p52 = scmp.eq.s32.totalorder %s18, 1
      %p53 = por %p51, %p52
      %p55 = scmp.ne.s32.totalorder %s38, %s54
      %p56 = scmp.eq.s32.totalorder %s18, 0
      %p57 = por %p55, %p56
      %s59 = sadd.s32 %s58, 1
      %p62 = scmp.eq.s32.totalorder %s12, 1
      %p63 = scmp.ne.s32.totalorder %s58, %s60
      %p64 = scmp.eq.s32.totalorder %s12, 0
      %p65 = por %p63, %p64
      %p66 = scmp.ne.s32.totalorder %s58, %s60
      %p67 = scmp.eq.s32.totalorder %s17, 1
      %p68 = por %p66, %p67
      %p69 = scmp.ne.s32.totalorder %s60, %s61
      %p70 = scmp.eq.s32.totalorder %s17, 0
      %p71 = por %p69, %p70
      %p72 = scmp.ne.s32.totalorder %s60, %s61
      %p73 = scmp.eq.s32.totalorder %s18, 1
      %p74 = por %p72, %p73
      %p76 = scmp.ne.s32.totalorder %s61, %s75
      %p77 = scmp.eq.s32.totalorder %s18, 0
      %p78 = por %p76, %p77
      %s80 = sadd.s32 %s79, 1
      %p83 = scmp.eq.s32.totalorder %s12, 1
      %p84 = scmp.ne.s32.totalorder %s79, %s81
      %p85 = scmp.eq.s32.totalorder %s12, 0
      %p86 = por %p84, %p85
      %p87 = scmp.ne.s32.totalorder %s79, %s81
      %p88 = scmp.eq.s32.totalorder %s17, 1
      %p89 = por %p87, %p88
      %p90 = scmp.ne.s32.totalorder %s81, %s82
      %p91 = scmp.eq.s32.totalorder %s17, 0
      %p92 = por %p90, %p91
      %p93 = scmp.ne.s32.totalorder %s81, %s82
      %p94 = scmp.eq.s32.totalorder %s18, 1
      %p95 = por %p93, %p94
      %p97 = scmp.ne.s32.totalorder %s82, %s96
      %p98 = scmp.eq.s32.totalorder %s18, 0
      %p99 = por %p97, %p98
      %s100 = ssub.s32 %s19, %s31
      %s101 = ssub.s32 %s20, %s27
      %s102 = sor.u32 %s100, %s101
      %p103 = scmp.eq.s32.totalorder %s102, 0
      %s105 = sadd.s32 %s104, 1
      %s106 = scalar_select %p103, %s104, %s105
      %p109 = pneg %p103
      %p110 = scmp.eq.s32.totalorder %s12, 1
      %p111 = por %p109, %p110
      %p112 = scmp.ne.s32.totalorder %s104, %s107
      %p113 = scmp.eq.s32.totalorder %s12, 0
      %p114 = por %p112, %p113
      %p115 = scmp.ne.s32.totalorder %s104, %s107
      %p116 = scmp.eq.s32.totalorder %s17, 1
      %p117 = por %p115, %p116
      %p118 = scmp.ne.s32.totalorder %s107, %s108
      %p119 = scmp.eq.s32.totalorder %s17, 0
      %p120 = por %p118, %p119
      %p121 = scmp.ne.s32.totalorder %s107, %s108
      %p122 = scmp.eq.s32.totalorder %s18, 1
      %p123 = por %p121, %p122
      %p125 = scmp.ne.s32.totalorder %s108, %s124
      %p126 = scmp.eq.s32.totalorder %s18, 0
      %p127 = por %p125, %p126
      %p128 = scmp.le.s32.totalorder 1, %s12
      %p129 = scmp.lt.s32.totalorder %s12, 3
      %p130 = pnand %p128, %p129
      %p131 = pneg %p130
      // Predicated region
      $region9: #{tpu_custom_call.1} parent=5 // pred_check
        _
      $region10: #{tpu_custom_call.1} parent=5 // pred_check_branch
        %133 = sbr.rel (%p130) target = $region12
      $region11: #{tpu_custom_call.1} parent=5 // pred_region
        %s134 = ssub.s32 %s12, 1
        // Predicated region
        $region13: #{tpu_custom_call.1} parent=11 // pred_check
          %p135 = pneg %p71
        $region14: #{tpu_custom_call.1} parent=11 // pred_check_branch
          %137 = sbr.rel (%p135) target = $region16
        $region15: #{tpu_custom_call.1} parent=11 // pred_region
          _
        $region16: #{tpu_custom_call.1} parent=11 // pred_fallthru
          _
        // Predicated region
        $region17: #{tpu_custom_call.1} parent=11 // pred_check
          %p138 = pneg %p92
        $region18: #{tpu_custom_call.1} parent=11 // pred_check_branch
          %140 = sbr.rel (%p138) target = $region20
        $region19: #{tpu_custom_call.1} parent=11 // pred_region
          _
        $region20: #{tpu_custom_call.1} parent=11 // pred_fallthru
          _
      $region12: #{tpu_custom_call.1} parent=5 // pred_fallthru
        _
      %p141 = scmp.lt.s32.totalorder %s12, 2
      // Predicated region
      $region21: #{tpu_custom_call.1} parent=5 // pred_check
        %p142 = pneg %p141
      $region22: #{tpu_custom_call.1} parent=5 // pred_check_branch
        %144 = sbr.rel (%p142) target = $region24
      $region23: #{tpu_custom_call.1} parent=5 // pred_region
        // Predicated region
        $region25: #{tpu_custom_call.1} parent=23 // pred_check
          %p145 = pneg %p44
        $region26: #{tpu_custom_call.1} parent=23 // pred_check_branch
          %147 = sbr.rel (%p145) target = $region28
        $region27: #{tpu_custom_call.1} parent=23 // pred_region
          %p148 = scmp.lt.s32.totalorder %s19, 1
          %s149 = scalar_select %p148, %s19, 1
          %s150 = smul.addr %s149, 4
          %s151 = smul.addr %s150, 4
          %s152 = scalar_lea.vmem %s0, %s151
        $region28: #{tpu_custom_call.1} parent=23 // pred_fallthru
          _
      $region24: #{tpu_custom_call.1} parent=5 // pred_fallthru
        _
      %p153 = scmp.le.s32.totalorder 1, %s12
      %p154 = scmp.lt.s32.totalorder %s12, 3
      %p155 = pnand %p153, %p154
      %p156 = pneg %p155
      // Predicated region
      $region29: #{tpu_custom_call.1} parent=5 // pred_check
        _
      $region30: #{tpu_custom_call.1} parent=5 // pred_check_branch
        %158 = sbr.rel (%p155) target = $region32
      $region31: #{tpu_custom_call.1} parent=5 // pred_region
        %s159 = ssub.s32 %s12, 1
        %p160 = scmp.lt.s32.totalorder %s21, 1
        %s161 = scalar_select %p160, %s21, 1
        %s162 = smul.addr %s161, 4
        %s163 = smul.addr %s162, 4
        %s164 = scalar_lea.vmem %s0, %s163
        %p165 = pneg %p50
        %p166 = pneg %p47
        %p167 = pneg %p71
        %p168 = pneg %p68
        %p169 = pneg %p92
        %p170 = pneg %p89
        %p171 = pneg %p120
        %p172 = pneg %p117
        %s173 = sand.u32 %s107, 1
        %s174 = scalar_lea.sflag [#allocation3], %s173
        %s175 = sand.u32 %s107, 1
        %s176 = smul.addr %s175, 24
        %s177 = scalar_lea.vmem [#allocation2], %s176
        %p178 = scmp.lt.s32.totalorder %s21, 1
        %s179 = scalar_select %p178, %s21, 1
        %s180 = smul.addr %s179, 4
        %s181 = smul.addr %s180, 4
        %s182 = scalar_lea.vmem %s0, %s181
        %s183 = smul.u32 3, %s22
        %v185 = vld [vmem:[%s182] sm:$0xff]
        %v186 = vld [vmem:[%s182 + $0x8] sm:$0xf]
        %v187 = vld [vmem:[%s1] sm:$0xf]
        %s188 = scalar_lea.vmem %s1, 4
        %v189 = vld [vmem:[%s188] sm:$0xf]
        %v192 = vunpack.c.l.b16 %v185
        %v193 = vunpack.c.h.b16 %v185
        %v194 = vunpack.c.l.b16 %v186
        %v195 = vpack.c.b16 %v192, %v192
        %v196 = vpack.c.b16 %v193, %v193
        %v197 = vpack.c.b16 %v194, %v194
        %198 = vrot.lane.b32.xlu0 %v195, 127
        %v199 = vpop.permute.xlu0 %198
        %200 = vrot.lane.b32.xlu0 %v196, 127
        %v201 = vpop.permute.xlu0 %200
        %202 = vrot.lane.b32.xlu0 %v197, 127
        %v203 = vpop.permute.xlu0 %202
        %vm204 = vcmask 1039360
        %v205 = vsel %vm204, %v199, %v201
        %v206 = vsel %vm204, %v201, %v203
        %vm207 = vcmask 64512
        %v209 = vsel %vm207, %v189, 0
        %vm211 = vcmask 1043456
        %v213 = vsel %vm211, %v205, 0
        %v216 = vsel %vm211, %v206, 0
        %v219 = vsel %vm211, %v203, 0
        %221 = vmatpush.bf16.msra.mxu0 0
        %222 = vmatpush.bf16.msra.mxu0 0
        %223 = vmatpush.bf16.msra.mxu0 0
        %224 = vmatpush.bf16.msra.mxu0 0
        %225 = vmatpush.bf16.msra.mxu0 0
        %226 = vmatpush.bf16.msra.mxu0 0
        %227 = vmatpush.bf16.msra.mxu0 0
        %228 = vmatpush.bf16.msra.mxu0 %v213
        %229 = vmatmul.bf16.gmra.mxu0 %v209
        %v230 = vpop.f32.mrf.mxu0
        %v231 = vadd.f32 0.0, %v230
        %v232 = vpop.f32.mrf.mxu0
        %233 = vdwg.mxu0
        %234 = vmatpush.bf16.msra.mxu0 0
        %235 = vmatpush.bf16.msra.mxu0 0
        %236 = vmatpush.bf16.msra.mxu0 0
        %237 = vmatpush.bf16.msra.mxu0 0
        %238 = vmatpush.bf16.msra.mxu0 0
        %239 = vmatpush.bf16.msra.mxu0 0
        %240 = vmatpush.bf16.msra.mxu0 0
        %241 = vmatpush.bf16.msra.mxu0 %v216
        %242 = vmatmul.bf16.gmra.mxu0 %v209
        %v243 = vpop.f32.mrf.mxu0
        %v244 = vadd.f32 0.0, %v243
        %v245 = vpop.f32.mrf.mxu0
        %246 = vdwg.mxu0
        %247 = vmatpush.bf16.msra.mxu0 0
        %248 = vmatpush.bf16.msra.mxu0 0
        %249 = vmatpush.bf16.msra.mxu0 0
        %250 = vmatpush.bf16.msra.mxu0 0
        %251 = vmatpush.bf16.msra.mxu0 0
        %252 = vmatpush.bf16.msra.mxu0 0
        %253 = vmatpush.bf16.msra.mxu0 0
        %254 = vmatpush.bf16.msra.mxu0 %v219
        %255 = vmatmul.bf16.gmra.mxu0 %v209
        %v256 = vpop.f32.mrf.mxu0
        %v257 = vadd.f32 0.0, %v256
        %v258 = vpop.f32.mrf.mxu0
        %259 = vdwg.mxu0
        %v261 = vsel %vm207, %v187, 0
        %v264 = vsel %vm211, %v195, 0
        %v267 = vsel %vm211, %v196, 0
        %v270 = vsel %vm211, %v197, 0
        %272 = vmatpush.bf16.msra.mxu0 0
        %273 = vmatpush.bf16.msra.mxu0 0
        %274 = vmatpush.bf16.msra.mxu0 0
        %275 = vmatpush.bf16.msra.mxu0 0
        %276 = vmatpush.bf16.msra.mxu0 0
        %277 = vmatpush.bf16.msra.mxu0 0
        %278 = vmatpush.bf16.msra.mxu0 0
        %279 = vmatpush.bf16.msra.mxu0 %v264
        %280 = vmatmul.bf16.gmra.mxu0 %v261
        %v281 = vpop.f32.mrf.mxu0
        %v282 = vadd.f32 %v231, %v281
        %v283 = vpop.f32.mrf.mxu0
        %284 = vdwg.mxu0
        %285 = vmatpush.bf16.msra.mxu0 0
        %286 = vmatpush.bf16.msra.mxu0 0
        %287 = vmatpush.bf16.msra.mxu0 0
        %288 = vmatpush.bf16.msra.mxu0 0
        %289 = vmatpush.bf16.msra.mxu0 0
        %290 = vmatpush.bf16.msra.mxu0 0
        %291 = vmatpush.bf16.msra.mxu0 0
        %292 = vmatpush.bf16.msra.mxu0 %v267
        %293 = vmatmul.bf16.gmra.mxu0 %v261
        %v294 = vpop.f32.mrf.mxu0
        %v295 = vadd.f32 %v244, %v294
        %v296 = vpop.f32.mrf.mxu0
        %297 = vdwg.mxu0
        %298 = vmatpush.bf16.msra.mxu0 0
        %299 = vmatpush.bf16.msra.mxu0 0
        %300 = vmatpush.bf16.msra.mxu0 0
        %301 = vmatpush.bf16.msra.mxu0 0
        %302 = vmatpush.bf16.msra.mxu0 0
        %303 = vmatpush.bf16.msra.mxu0 0
        %304 = vmatpush.bf16.msra.mxu0 0
        %305 = vmatpush.bf16.msra.mxu0 %v270
        %306 = vmatmul.bf16.gmra.mxu0 %v261
        %v307 = vpop.f32.mrf.mxu0
        %v308 = vadd.f32 %v257, %v307
        %v309 = vpop.f32.mrf.mxu0
        %310 = vdwg.mxu0
        %s311 = scalar_lea.vmem %s1, 8
        %v312 = vld [vmem:[%s311] sm:$0xf]
        %313 = vrot.lane.b32.xlu0 %v195, 126
        %v314 = vpop.permute.xlu0 %313
        %315 = vrot.lane.b32.xlu0 %v196, 126
        %v316 = vpop.permute.xlu0 %315
        %317 = vrot.lane.b32.xlu0 %v197, 126
        %v318 = vpop.permute.xlu0 %317
        %vm319 = vcmask 1031168
        %v320 = vsel %vm319, %v314, %v316
        %v321 = vsel %vm319, %v316, %v318
        %v323 = vsel %vm207, %v312, 0
        %v326 = vsel %vm211, %v320, 0
        %v329 = vsel %vm211, %v321, 0
        %v332 = vsel %vm211, %v318, 0
        %334 = vmatpush.bf16.msra.mxu0 0
        %335 = vmatpush.bf16.msra.mxu0 0
        %336 = vmatpush.bf16.msra.mxu0 0
        %337 = vmatpush.bf16.msra.mxu0 0
        %338 = vmatpush.bf16.msra.mxu0 0
        %339 = vmatpush.bf16.msra.mxu0 0
        %340 = vmatpush.bf16.msra.mxu0 0
        %341 = vmatpush.bf16.msra.mxu0 %v326
        %342 = vmatmul.bf16.gmra.mxu0 %v323
        %v343 = vpop.f32.mrf.mxu0
        %v344 = vadd.f32 0.0, %v343
        %v345 = vpop.f32.mrf.mxu0
        %346 = vdwg.mxu0
        %347 = vmatpush.bf16.msra.mxu0 0
        %348 = vmatpush.bf16.msra.mxu0 0
        %349 = vmatpush.bf16.msra.mxu0 0
        %350 = vmatpush.bf16.msra.mxu0 0
        %351 = vmatpush.bf16.msra.mxu0 0
        %352 = vmatpush.bf16.msra.mxu0 0
        %353 = vmatpush.bf16.msra.mxu0 0
        %354 = vmatpush.bf16.msra.mxu0 %v329
        %355 = vmatmul.bf16.gmra.mxu0 %v323
        %v356 = vpop.f32.mrf.mxu0
        %v357 = vadd.f32 0.0, %v356
        %v358 = vpop.f32.mrf.mxu0
        %359 = vdwg.mxu0
        %360 = vmatpush.bf16.msra.mxu0 0
        %361 = vmatpush.bf16.msra.mxu0 0
        %362 = vmatpush.bf16.msra.mxu0 0
        %363 = vmatpush.bf16.msra.mxu0 0
        %364 = vmatpush.bf16.msra.mxu0 0
        %365 = vmatpush.bf16.msra.mxu0 0
        %366 = vmatpush.bf16.msra.mxu0 0
        %367 = vmatpush.bf16.msra.mxu0 %v332
        %368 = vmatmul.bf16.gmra.mxu0 %v323
        %v369 = vpop.f32.mrf.mxu0
        %v370 = vadd.f32 0.0, %v369
        %v371 = vpop.f32.mrf.mxu0
        %372 = vdwg.mxu0
        %v373 = vadd.f32 %v282, %v344
        %v374 = vadd.f32 %v295, %v357
        %v375 = vadd.f32 %v308, %v370
        %s376 = scalar_lea.vmem %s1, 12
        %v377 = vld [vmem:[%s376] sm:$0xf]
        %378 = vrot.lane.b32.xlu0 %v195, 125
        %v379 = vpop.permute.xlu0 %378
        %380 = vrot.lane.b32.xlu0 %v196, 125
        %v381 = vpop.permute.xlu0 %380
        %382 = vrot.lane.b32.xlu0 %v197, 125
        %v383 = vpop.permute.xlu0 %382
        %vm384 = vcmask 1022976
        %v385 = vsel %vm384, %v379, %v381
        %v386 = vsel %vm384, %v381, %v383
        %v388 = vsel %vm207, %v377, 0
        %v391 = vsel %vm211, %v385, 0
        %v394 = vsel %vm211, %v386, 0
        %v397 = vsel %vm211, %v383, 0
        %399 = vmatpush.bf16.msra.mxu0 0
        %400 = vmatpush.bf16.msra.mxu0 0
        %401 = vmatpush.bf16.msra.mxu0 0
        %402 = vmatpush.bf16.msra.mxu0 0
        %403 = vmatpush.bf16.msra.mxu0 0
        %404 = vmatpush.bf16.msra.mxu0 0
        %405 = vmatpush.bf16.msra.mxu0 0
        %406 = vmatpush.bf16.msra.mxu0 %v391
        %407 = vmatmul.bf16.gmra.mxu0 %v388
        %v408 = vpop.f32.mrf.mxu0
        %v409 = vadd.f32 0.0, %v408
        %v410 = vpop.f32.mrf.mxu0
        %411 = vdwg.mxu0
        %412 = vmatpush.bf16.msra.mxu0 0
        %413 = vmatpush.bf16.msra.mxu0 0
        %414 = vmatpush.bf16.msra.mxu0 0
        %415 = vmatpush.bf16.msra.mxu0 0
        %416 = vmatpush.bf16.msra.mxu0 0
        %417 = vmatpush.bf16.msra.mxu0 0
        %418 = vmatpush.bf16.msra.mxu0 0
        %419 = vmatpush.bf16.msra.mxu0 %v394
        %420 = vmatmul.bf16.gmra.mxu0 %v388
        %v421 = vpop.f32.mrf.mxu0
        %v422 = vadd.f32 0.0, %v421
        %v423 = vpop.f32.mrf.mxu0
        %424 = vdwg.mxu0
        %425 = vmatpush.bf16.msra.mxu0 0
        %426 = vmatpush.bf16.msra.mxu0 0
        %427 = vmatpush.bf16.msra.mxu0 0
        %428 = vmatpush.bf16.msra.mxu0 0
        %429 = vmatpush.bf16.msra.mxu0 0
        %430 = vmatpush.bf16.msra.mxu0 0
        %431 = vmatpush.bf16.msra.mxu0 0
        %432 = vmatpush.bf16.msra.mxu0 %v397
        %433 = vmatmul.bf16.gmra.mxu0 %v388
        %v434 = vpop.f32.mrf.mxu0
        %v435 = vadd.f32 0.0, %v434
        %v436 = vpop.f32.mrf.mxu0
        %437 = vdwg.mxu0
        %v438 = vadd.f32 %v373, %v409
        %v439 = vadd.f32 %v374, %v422
        %v440 = vadd.f32 %v375, %v435
        %s441 = scalar_lea.vmem %s1, 16
        %v442 = vld [vmem:[%s441] sm:$0xf]
        %443 = vrot.lane.b32.xlu0 %v195, 124
        %v444 = vpop.permute.xlu0 %443
        %445 = vrot.lane.b32.xlu0 %v196, 124
        %v446 = vpop.permute.xlu0 %445
        %447 = vrot.lane.b32.xlu0 %v197, 124
        %v448 = vpop.permute.xlu0 %447
        %vm449 = vcmask 1014784
        %v450 = vsel %vm449, %v444, %v446
        %v451 = vsel %vm449, %v446, %v448
        %v453 = vsel %vm207, %v442, 0
        %v456 = vsel %vm211, %v450, 0
        %v459 = vsel %vm211, %v451, 0
        %v462 = vsel %vm211, %v448, 0
        %464 = vmatpush.bf16.msra.mxu0 0
        %465 = vmatpush.bf16.msra.mxu0 0
        %466 = vmatpush.bf16.msra.mxu0 0
        %467 = vmatpush.bf16.msra.mxu0 0
        %468 = vmatpush.bf16.msra.mxu0 0
        %469 = vmatpush.bf16.msra.mxu0 0
        %470 = vmatpush.bf16.msra.mxu0 0
        %471 = vmatpush.bf16.msra.mxu0 %v456
        %472 = vmatmul.bf16.gmra.mxu0 %v453
        %v473 = vpop.f32.mrf.mxu0
        %v474 = vadd.f32 0.0, %v473
        %v475 = vpop.f32.mrf.mxu0
        %476 = vdwg.mxu0
        %477 = vmatpush.bf16.msra.mxu0 0
        %478 = vmatpush.bf16.msra.mxu0 0
        %479 = vmatpush.bf16.msra.mxu0 0
        %480 = vmatpush.bf16.msra.mxu0 0
        %481 = vmatpush.bf16.msra.mxu0 0
        %482 = vmatpush.bf16.msra.mxu0 0
        %483 = vmatpush.bf16.msra.mxu0 0
        %484 = vmatpush.bf16.msra.mxu0 %v459
        %485 = vmatmul.bf16.gmra.mxu0 %v453
        %v486 = vpop.f32.mrf.mxu0
        %v487 = vadd.f32 0.0, %v486
        %v488 = vpop.f32.mrf.mxu0
        %489 = vdwg.mxu0
        %490 = vmatpush.bf16.msra.mxu0 0
        %491 = vmatpush.bf16.msra.mxu0 0
        %492 = vmatpush.bf16.msra.mxu0 0
        %493 = vmatpush.bf16.msra.mxu0 0
        %494 = vmatpush.bf16.msra.mxu0 0
        %495 = vmatpush.bf16.msra.mxu0 0
        %496 = vmatpush.bf16.msra.mxu0 0
        %497 = vmatpush.bf16.msra.mxu0 %v462
        %498 = vmatmul.bf16.gmra.mxu0 %v453
        %v499 = vpop.f32.mrf.mxu0
        %v500 = vadd.f32 0.0, %v499
        %v501 = vpop.f32.mrf.mxu0
        %502 = vdwg.mxu0
        %v503 = vadd.f32 %v438, %v474
        %v504 = vadd.f32 %v439, %v487
        %v505 = vadd.f32 %v440, %v500
        %s506 = scalar_lea.vmem %s1, 20
        %v507 = vld [vmem:[%s506] sm:$0xf]
        %508 = vrot.lane.b32.xlu0 %v195, 108
        %v509 = vpop.permute.xlu0 %508
        %510 = vrot.lane.b32.xlu0 %v196, 108
        %v511 = vpop.permute.xlu0 %510
        %512 = vrot.lane.b32.xlu0 %v197, 108
        %v513 = vpop.permute.xlu0 %512
        %vm514 = vcmask 883712
        %v515 = vsel %vm514, %v509, %v511
        %v516 = vsel %vm514, %v511, %v513
        %v518 = vsel %vm207, %v507, 0
        %v521 = vsel %vm211, %v515, 0
        %v524 = vsel %vm211, %v516, 0
        %v527 = vsel %vm211, %v513, 0
        %529 = vmatpush.bf16.msra.mxu0 0
        %530 = vmatpush.bf16.msra.mxu0 0
        %531 = vmatpush.bf16.msra.mxu0 0
        %532 = vmatpush.bf16.msra.mxu0 0
        %533 = vmatpush.bf16.msra.mxu0 0
        %534 = vmatpush.bf16.msra.mxu0 0
        %535 = vmatpush.bf16.msra.mxu0 0
        %536 = vmatpush.bf16.msra.mxu0 %v521
        %537 = vmatmul.bf16.gmra.mxu0 %v518
        %v538 = vpop.f32.mrf.mxu0
        %v539 = vadd.f32 0.0, %v538
        %v540 = vpop.f32.mrf.mxu0
        %541 = vdwg.mxu0
        %542 = vmatpush.bf16.msra.mxu0 0
        %543 = vmatpush.bf16.msra.mxu0 0
        %544 = vmatpush.bf16.msra.mxu0 0
        %545 = vmatpush.bf16.msra.mxu0 0
        %546 = vmatpush.bf16.msra.mxu0 0
        %547 = vmatpush.bf16.msra.mxu0 0
        %548 = vmatpush.bf16.msra.mxu0 0
        %549 = vmatpush.bf16.msra.mxu0 %v524
        %550 = vmatmul.bf16.gmra.mxu0 %v518
        %v551 = vpop.f32.mrf.mxu0
        %v552 = vadd.f32 0.0, %v551
        %v553 = vpop.f32.mrf.mxu0
        %554 = vdwg.mxu0
        %555 = vmatpush.bf16.msra.mxu0 0
        %556 = vmatpush.bf16.msra.mxu0 0
        %557 = vmatpush.bf16.msra.mxu0 0
        %558 = vmatpush.bf16.msra.mxu0 0
        %559 = vmatpush.bf16.msra.mxu0 0
        %560 = vmatpush.bf16.msra.mxu0 0
        %561 = vmatpush.bf16.msra.mxu0 0
        %562 = vmatpush.bf16.msra.mxu0 %v527
        %563 = vmatmul.bf16.gmra.mxu0 %v518
        %v564 = vpop.f32.mrf.mxu0
        %v565 = vadd.f32 0.0, %v564
        %v566 = vpop.f32.mrf.mxu0
        %567 = vdwg.mxu0
        %v568 = vadd.f32 %v503, %v539
        %v569 = vadd.f32 %v504, %v552
        %v570 = vadd.f32 %v505, %v565
        %s571 = scalar_lea.vmem %s1, 24
        %v572 = vld [vmem:[%s571] sm:$0xf]
        %573 = vrot.lane.b32.xlu0 %v195, 107
        %v574 = vpop.permute.xlu0 %573
        %575 = vrot.lane.b32.xlu0 %v196, 107
        %v576 = vpop.permute.xlu0 %575
        %577 = vrot.lane.b32.xlu0 %v197, 107
        %v578 = vpop.permute.xlu0 %577
        %vm579 = vcmask 875520
        %v580 = vsel %vm579, %v574, %v576
        %v581 = vsel %vm579, %v576, %v578
        %v583 = vsel %vm207, %v572, 0
        %v586 = vsel %vm211, %v580, 0
        %v589 = vsel %vm211, %v581, 0
        %v592 = vsel %vm211, %v578, 0
        %594 = vmatpush.bf16.msra.mxu0 0
        %595 = vmatpush.bf16.msra.mxu0 0
        %596 = vmatpush.bf16.msra.mxu0 0
        %597 = vmatpush.bf16.msra.mxu0 0
        %598 = vmatpush.bf16.msra.mxu0 0
        %599 = vmatpush.bf16.msra.mxu0 0
        %600 = vmatpush.bf16.msra.mxu0 0
        %601 = vmatpush.bf16.msra.mxu0 %v586
        %602 = vmatmul.bf16.gmra.mxu0 %v583
        %v603 = vpop.f32.mrf.mxu0
        %v604 = vadd.f32 0.0, %v603
        %v605 = vpop.f32.mrf.mxu0
        %606 = vdwg.mxu0
        %607 = vmatpush.bf16.msra.mxu0 0
        %608 = vmatpush.bf16.msra.mxu0 0
        %609 = vmatpush.bf16.msra.mxu0 0
        %610 = vmatpush.bf16.msra.mxu0 0
        %611 = vmatpush.bf16.msra.mxu0 0
        %612 = vmatpush.bf16.msra.mxu0 0
        %613 = vmatpush.bf16.msra.mxu0 0
        %614 = vmatpush.bf16.msra.mxu0 %v589
        %615 = vmatmul.bf16.gmra.mxu0 %v583
        %v616 = vpop.f32.mrf.mxu0
        %v617 = vadd.f32 0.0, %v616
        %v618 = vpop.f32.mrf.mxu0
        %619 = vdwg.mxu0
        %620 = vmatpush.bf16.msra.mxu0 0
        %621 = vmatpush.bf16.msra.mxu0 0
        %622 = vmatpush.bf16.msra.mxu0 0
        %623 = vmatpush.bf16.msra.mxu0 0
        %624 = vmatpush.bf16.msra.mxu0 0
        %625 = vmatpush.bf16.msra.mxu0 0
        %626 = vmatpush.bf16.msra.mxu0 0
        %627 = vmatpush.bf16.msra.mxu0 %v592
        %628 = vmatmul.bf16.gmra.mxu0 %v583
        %v629 = vpop.f32.mrf.mxu0
        %v630 = vadd.f32 0.0, %v629
        %v631 = vpop.f32.mrf.mxu0
        %632 = vdwg.mxu0
        %v633 = vadd.f32 %v568, %v604
        %v634 = vadd.f32 %v569, %v617
        %v635 = vadd.f32 %v570, %v630
        %s636 = scalar_lea.vmem %s1, 28
        %v637 = vld [vmem:[%s636] sm:$0xf]
        %638 = vrot.lane.b32.xlu0 %v195, 106
        %v639 = vpop.permute.xlu0 %638
        %640 = vrot.lane.b32.xlu0 %v196, 106
        %v641 = vpop.permute.xlu0 %640
        %642 = vrot.lane.b32.xlu0 %v197, 106
        %v643 = vpop.permute.xlu0 %642
        %vm644 = vcmask 867328
        %v645 = vsel %vm644, %v639, %v641
        %v646 = vsel %vm644, %v641, %v643
        %v648 = vsel %vm207, %v637, 0
        %v651 = vsel %vm211, %v645, 0
        %v654 = vsel %vm211, %v646, 0
        %v657 = vsel %vm211, %v643, 0
        %659 = vmatpush.bf16.msra.mxu0 0
        %660 = vmatpush.bf16.msra.mxu0 0
        %661 = vmatpush.bf16.msra.mxu0 0
        %662 = vmatpush.bf16.msra.mxu0 0
        %663 = vmatpush.bf16.msra.mxu0 0
        %664 = vmatpush.bf16.msra.mxu0 0
        %665 = vmatpush.bf16.msra.mxu0 0
        %666 = vmatpush.bf16.msra.mxu0 %v651
        %667 = vmatmul.bf16.gmra.mxu0 %v648
        %v668 = vpop.f32.mrf.mxu0
        %v669 = vadd.f32 0.0, %v668
        %v670 = vpop.f32.mrf.mxu0
        %671 = vdwg.mxu0
        %672 = vmatpush.bf16.msra.mxu0 0
        %673 = vmatpush.bf16.msra.mxu0 0
        %674 = vmatpush.bf16.msra.mxu0 0
        %675 = vmatpush.bf16.msra.mxu0 0
        %676 = vmatpush.bf16.msra.mxu0 0
        %677 = vmatpush.bf16.msra.mxu0 0
        %678 = vmatpush.bf16.msra.mxu0 0
        %679 = vmatpush.bf16.msra.mxu0 %v654
        %680 = vmatmul.bf16.gmra.mxu0 %v648
        %v681 = vpop.f32.mrf.mxu0
        %v682 = vadd.f32 0.0, %v681
        %v683 = vpop.f32.mrf.mxu0
        %684 = vdwg.mxu0
        %685 = vmatpush.bf16.msra.mxu0 0
        %686 = vmatpush.bf16.msra.mxu0 0
        %687 = vmatpush.bf16.msra.mxu0 0
        %688 = vmatpush.bf16.msra.mxu0 0
        %689 = vmatpush.bf16.msra.mxu0 0
        %690 = vmatpush.bf16.msra.mxu0 0
        %691 = vmatpush.bf16.msra.mxu0 0
        %692 = vmatpush.bf16.msra.mxu0 %v657
        %693 = vmatmul.bf16.gmra.mxu0 %v648
        %v694 = vpop.f32.mrf.mxu0
        %v695 = vadd.f32 0.0, %v694
        %v696 = vpop.f32.mrf.mxu0
        %697 = vdwg.mxu0
        %v698 = vadd.f32 %v633, %v669
        %v699 = vadd.f32 %v634, %v682
        %v700 = vadd.f32 %v635, %v695
        %s701 = scalar_lea.vmem %s1, 32
        %v702 = vld [vmem:[%s701] sm:$0xf]
        %703 = vrot.lane.b32.xlu0 %v195, 105
        %v704 = vpop.permute.xlu0 %703
        %705 = vrot.lane.b32.xlu0 %v196, 105
        %v706 = vpop.permute.xlu0 %705
        %707 = vrot.lane.b32.xlu0 %v197, 105
        %v708 = vpop.permute.xlu0 %707
        %vm709 = vcmask 859136
        %v710 = vsel %vm709, %v704, %v706
        %v711 = vsel %vm709, %v706, %v708
        %v713 = vsel %vm207, %v702, 0
        %v716 = vsel %vm211, %v710, 0
        %v719 = vsel %vm211, %v711, 0
        %v722 = vsel %vm211, %v708, 0
        %724 = vmatpush.bf16.msra.mxu0 0
        %725 = vmatpush.bf16.msra.mxu0 0
        %726 = vmatpush.bf16.msra.mxu0 0
        %727 = vmatpush.bf16.msra.mxu0 0
        %728 = vmatpush.bf16.msra.mxu0 0
        %729 = vmatpush.bf16.msra.mxu0 0
        %730 = vmatpush.bf16.msra.mxu0 0
        %731 = vmatpush.bf16.msra.mxu0 %v716
        %732 = vmatmul.bf16.gmra.mxu0 %v713
        %v733 = vpop.f32.mrf.mxu0
        %v734 = vadd.f32 0.0, %v733
        %v735 = vpop.f32.mrf.mxu0
        %736 = vdwg.mxu0
        %737 = vmatpush.bf16.msra.mxu0 0
        %738 = vmatpush.bf16.msra.mxu0 0
        %739 = vmatpush.bf16.msra.mxu0 0
        %740 = vmatpush.bf16.msra.mxu0 0
        %741 = vmatpush.bf16.msra.mxu0 0
        %742 = vmatpush.bf16.msra.mxu0 0
        %743 = vmatpush.bf16.msra.mxu0 0
        %744 = vmatpush.bf16.msra.mxu0 %v719
        %745 = vmatmul.bf16.gmra.mxu0 %v713
        %v746 = vpop.f32.mrf.mxu0
        %v747 = vadd.f32 0.0, %v746
        %v748 = vpop.f32.mrf.mxu0
        %749 = vdwg.mxu0
        %750 = vmatpush.bf16.msra.mxu0 0
        %751 = vmatpush.bf16.msra.mxu0 0
        %752 = vmatpush.bf16.msra.mxu0 0
        %753 = vmatpush.bf16.msra.mxu0 0
        %754 = vmatpush.bf16.msra.mxu0 0
        %755 = vmatpush.bf16.msra.mxu0 0
        %756 = vmatpush.bf16.msra.mxu0 0
        %757 = vmatpush.bf16.msra.mxu0 %v722
        %758 = vmatmul.bf16.gmra.mxu0 %v713
        %v759 = vpop.f32.mrf.mxu0
        %v760 = vadd.f32 0.0, %v759
        %v761 = vpop.f32.mrf.mxu0
        %762 = vdwg.mxu0
        %v763 = vadd.f32 %v698, %v734
        %v764 = vadd.f32 %v699, %v747
        %v765 = vadd.f32 %v700, %v760
        %s766 = scalar_lea.vmem %s1, 36
        %v767 = vld [vmem:[%s766] sm:$0xf]
        %768 = vrot.lane.b32.xlu0 %v195, 104
        %v769 = vpop.permute.xlu0 %768
        %770 = vrot.lane.b32.xlu0 %v196, 104
        %v771 = vpop.permute.xlu0 %770
        %772 = vrot.lane.b32.xlu0 %v197, 104
        %v773 = vpop.permute.xlu0 %772
        %vm774 = vcmask 850944
        %v775 = vsel %vm774, %v769, %v771
        %v776 = vsel %vm774, %v771, %v773
        %v778 = vsel %vm207, %v767, 0
        %v781 = vsel %vm211, %v775, 0
        %v784 = vsel %vm211, %v776, 0
        %v787 = vsel %vm211, %v773, 0
        %789 = vmatpush.bf16.msra.mxu0 0
        %790 = vmatpush.bf16.msra.mxu0 0
        %791 = vmatpush.bf16.msra.mxu0 0
        %792 = vmatpush.bf16.msra.mxu0 0
        %793 = vmatpush.bf16.msra.mxu0 0
        %794 = vmatpush.bf16.msra.mxu0 0
        %795 = vmatpush.bf16.msra.mxu0 0
        %796 = vmatpush.bf16.msra.mxu0 %v781
        %797 = vmatmul.bf16.gmra.mxu0 %v778
        %v798 = vpop.f32.mrf.mxu0
        %v799 = vadd.f32 0.0, %v798
        %v800 = vpop.f32.mrf.mxu0
        %801 = vdwg.mxu0
        %802 = vmatpush.bf16.msra.mxu0 0
        %803 = vmatpush.bf16.msra.mxu0 0
        %804 = vmatpush.bf16.msra.mxu0 0
        %805 = vmatpush.bf16.msra.mxu0 0
        %806 = vmatpush.bf16.msra.mxu0 0
        %807 = vmatpush.bf16.msra.mxu0 0
        %808 = vmatpush.bf16.msra.mxu0 0
        %809 = vmatpush.bf16.msra.mxu0 %v784
        %810 = vmatmul.bf16.gmra.mxu0 %v778
        %v811 = vpop.f32.mrf.mxu0
        %v812 = vadd.f32 0.0, %v811
        %v813 = vpop.f32.mrf.mxu0
        %814 = vdwg.mxu0
        %815 = vmatpush.bf16.msra.mxu0 0
        %816 = vmatpush.bf16.msra.mxu0 0
        %817 = vmatpush.bf16.msra.mxu0 0
        %818 = vmatpush.bf16.msra.mxu0 0
        %819 = vmatpush.bf16.msra.mxu0 0
        %820 = vmatpush.bf16.msra.mxu0 0
        %821 = vmatpush.bf16.msra.mxu0 0
        %822 = vmatpush.bf16.msra.mxu0 %v787
        %823 = vmatmul.bf16.gmra.mxu0 %v778
        %v824 = vpop.f32.mrf.mxu0
        %v825 = vadd.f32 0.0, %v824
        %v826 = vpop.f32.mrf.mxu0
        %827 = vdwg.mxu0
        %v828 = vadd.f32 %v763, %v799
        %v829 = vadd.f32 %v764, %v812
        %v830 = vadd.f32 %v765, %v825
        %s831 = scalar_lea.vmem %s1, 40
        %v832 = vld [vmem:[%s831] sm:$0xf]
        %833 = vrot.lane.b32.xlu0 %v195, 88
        %v834 = vpop.permute.xlu0 %833
        %835 = vrot.lane.b32.xlu0 %v196, 88
        %v836 = vpop.permute.xlu0 %835
        %837 = vrot.lane.b32.xlu0 %v197, 88
        %v838 = vpop.permute.xlu0 %837
        %vm839 = vcmask 719872
        %v840 = vsel %vm839, %v834, %v836
        %v841 = vsel %vm839, %v836, %v838
        %v843 = vsel %vm207, %v832, 0
        %v846 = vsel %vm211, %v840, 0
        %v849 = vsel %vm211, %v841, 0
        %v852 = vsel %vm211, %v838, 0
        %854 = vmatpush.bf16.msra.mxu0 0
        %855 = vmatpush.bf16.msra.mxu0 0
        %856 = vmatpush.bf16.msra.mxu0 0
        %857 = vmatpush.bf16.msra.mxu0 0
        %858 = vmatpush.bf16.msra.mxu0 0
        %859 = vmatpush.bf16.msra.mxu0 0
        %860 = vmatpush.bf16.msra.mxu0 0
        %861 = vmatpush.bf16.msra.mxu0 %v846
        %862 = vmatmul.bf16.gmra.mxu0 %v843
        %v863 = vpop.f32.mrf.mxu0
        %v864 = vadd.f32 0.0, %v863
        %v865 = vpop.f32.mrf.mxu0
        %866 = vdwg.mxu0
        %867 = vmatpush.bf16.msra.mxu0 0
        %868 = vmatpush.bf16.msra.mxu0 0
        %869 = vmatpush.bf16.msra.mxu0 0
        %870 = vmatpush.bf16.msra.mxu0 0
        %871 = vmatpush.bf16.msra.mxu0 0
        %872 = vmatpush.bf16.msra.mxu0 0
        %873 = vmatpush.bf16.msra.mxu0 0
        %874 = vmatpush.bf16.msra.mxu0 %v849
        %875 = vmatmul.bf16.gmra.mxu0 %v843
        %v876 = vpop.f32.mrf.mxu0
        %v877 = vadd.f32 0.0, %v876
        %v878 = vpop.f32.mrf.mxu0
        %879 = vdwg.mxu0
        %880 = vmatpush.bf16.msra.mxu0 0
        %881 = vmatpush.bf16.msra.mxu0 0
        %882 = vmatpush.bf16.msra.mxu0 0
        %883 = vmatpush.bf16.msra.mxu0 0
        %884 = vmatpush.bf16.msra.mxu0 0
        %885 = vmatpush.bf16.msra.mxu0 0
        %886 = vmatpush.bf16.msra.mxu0 0
        %887 = vmatpush.bf16.msra.mxu0 %v852
        %888 = vmatmul.bf16.gmra.mxu0 %v843
        %v889 = vpop.f32.mrf.mxu0
        %v890 = vadd.f32 0.0, %v889
        %v891 = vpop.f32.mrf.mxu0
        %892 = vdwg.mxu0
        %v893 = vadd.f32 %v828, %v864
        %v894 = vadd.f32 %v829, %v877
        %v895 = vadd.f32 %v830, %v890
        %s896 = scalar_lea.vmem %s1, 44
        %v897 = vld [vmem:[%s896] sm:$0xf]
        %898 = vrot.lane.b32.xlu0 %v195, 87
        %v899 = vpop.permute.xlu0 %898
        %900 = vrot.lane.b32.xlu0 %v196, 87
        %v901 = vpop.permute.xlu0 %900
        %902 = vrot.lane.b32.xlu0 %v197, 87
        %v903 = vpop.permute.xlu0 %902
        %vm904 = vcmask 711680
        %v905 = vsel %vm904, %v899, %v901
        %v906 = vsel %vm904, %v901, %v903
        %v908 = vsel %vm207, %v897, 0
        %v911 = vsel %vm211, %v905, 0
        %v914 = vsel %vm211, %v906, 0
        %v917 = vsel %vm211, %v903, 0
        %919 = vmatpush.bf16.msra.mxu0 0
        %920 = vmatpush.bf16.msra.mxu0 0
        %921 = vmatpush.bf16.msra.mxu0 0
        %922 = vmatpush.bf16.msra.mxu0 0
        %923 = vmatpush.bf16.msra.mxu0 0
        %924 = vmatpush.bf16.msra.mxu0 0
        %925 = vmatpush.bf16.msra.mxu0 0
        %926 = vmatpush.bf16.msra.mxu0 %v911
        %927 = vmatmul.bf16.gmra.mxu0 %v908
        %v928 = vpop.f32.mrf.mxu0
        %v929 = vadd.f32 0.0, %v928
        %v930 = vpop.f32.mrf.mxu0
        %931 = vdwg.mxu0
        %932 = vmatpush.bf16.msra.mxu0 0
        %933 = vmatpush.bf16.msra.mxu0 0
        %934 = vmatpush.bf16.msra.mxu0 0
        %935 = vmatpush.bf16.msra.mxu0 0
        %936 = vmatpush.bf16.msra.mxu0 0
        %937 = vmatpush.bf16.msra.mxu0 0
        %938 = vmatpush.bf16.msra.mxu0 0
        %939 = vmatpush.bf16.msra.mxu0 %v914
        %940 = vmatmul.bf16.gmra.mxu0 %v908
        %v941 = vpop.f32.mrf.mxu0
        %v942 = vadd.f32 0.0, %v941
        %v943 = vpop.f32.mrf.mxu0
        %944 = vdwg.mxu0
        %945 = vmatpush.bf16.msra.mxu0 0
        %946 = vmatpush.bf16.msra.mxu0 0
        %947 = vmatpush.bf16.msra.mxu0 0
        %948 = vmatpush.bf16.msra.mxu0 0
        %949 = vmatpush.bf16.msra.mxu0 0
        %950 = vmatpush.bf16.msra.mxu0 0
        %951 = vmatpush.bf16.msra.mxu0 0
        %952 = vmatpush.bf16.msra.mxu0 %v917
        %953 = vmatmul.bf16.gmra.mxu0 %v908
        %v954 = vpop.f32.mrf.mxu0
        %v955 = vadd.f32 0.0, %v954
        %v956 = vpop.f32.mrf.mxu0
        %957 = vdwg.mxu0
        %v958 = vadd.f32 %v893, %v929
        %v959 = vadd.f32 %v894, %v942
        %v960 = vadd.f32 %v895, %v955
        %s961 = scalar_lea.vmem %s1, 48
        %v962 = vld [vmem:[%s961] sm:$0xf]
        %963 = vrot.lane.b32.xlu0 %v195, 86
        %v964 = vpop.permute.xlu0 %963
        %965 = vrot.lane.b32.xlu0 %v196, 86
        %v966 = vpop.permute.xlu0 %965
        %967 = vrot.lane.b32.xlu0 %v197, 86
        %v968 = vpop.permute.xlu0 %967
        %vm969 = vcmask 703488
        %v970 = vsel %vm969, %v964, %v966
        %v971 = vsel %vm969, %v966, %v968
        %v973 = vsel %vm207, %v962, 0
        %v976 = vsel %vm211, %v970, 0
        %v979 = vsel %vm211, %v971, 0
        %v982 = vsel %vm211, %v968, 0
        %984 = vmatpush.bf16.msra.mxu0 0
        %985 = vmatpush.bf16.msra.mxu0 0
        %986 = vmatpush.bf16.msra.mxu0 0
        %987 = vmatpush.bf16.msra.mxu0 0
        %988 = vmatpush.bf16.msra.mxu0 0
        %989 = vmatpush.bf16.msra.mxu0 0
        %990 = vmatpush.bf16.msra.mxu0 0
        %991 = vmatpush.bf16.msra.mxu0 %v976
        %992 = vmatmul.bf16.gmra.mxu0 %v973
        %v993 = vpop.f32.mrf.mxu0
        %v994 = vadd.f32 0.0, %v993
        %v995 = vpop.f32.mrf.mxu0
        %996 = vdwg.mxu0
        %997 = vmatpush.bf16.msra.mxu0 0
        %998 = vmatpush.bf16.msra.mxu0 0
        %999 = vmatpush.bf16.msra.mxu0 0
        %1000 = vmatpush.bf16.msra.mxu0 0
        %1001 = vmatpush.bf16.msra.mxu0 0
        %1002 = vmatpush.bf16.msra.mxu0 0
        %1003 = vmatpush.bf16.msra.mxu0 0
        %1004 = vmatpush.bf16.msra.mxu0 %v979
        %1005 = vmatmul.bf16.gmra.mxu0 %v973
        %v1006 = vpop.f32.mrf.mxu0
        %v1007 = vadd.f32 0.0, %v1006
        %v1008 = vpop.f32.mrf.mxu0
        %1009 = vdwg.mxu0
        %1010 = vmatpush.bf16.msra.mxu0 0
        %1011 = vmatpush.bf16.msra.mxu0 0
        %1012 = vmatpush.bf16.msra.mxu0 0
        %1013 = vmatpush.bf16.msra.mxu0 0
        %1014 = vmatpush.bf16.msra.mxu0 0
        %1015 = vmatpush.bf16.msra.mxu0 0
        %1016 = vmatpush.bf16.msra.mxu0 0
        %1017 = vmatpush.bf16.msra.mxu0 %v982
        %1018 = vmatmul.bf16.gmra.mxu0 %v973
        %v1019 = vpop.f32.mrf.mxu0
        %v1020 = vadd.f32 0.0, %v1019
        %v1021 = vpop.f32.mrf.mxu0
        %1022 = vdwg.mxu0
        %v1023 = vadd.f32 %v958, %v994
        %v1024 = vadd.f32 %v959, %v1007
        %v1025 = vadd.f32 %v960, %v1020
        %s1026 = scalar_lea.vmem %s1, 52
        %v1027 = vld [vmem:[%s1026] sm:$0xf]
        %1028 = vrot.lane.b32.xlu0 %v195, 85
        %v1029 = vpop.permute.xlu0 %1028
        %1030 = vrot.lane.b32.xlu0 %v196, 85
        %v1031 = vpop.permute.xlu0 %1030
        %1032 = vrot.lane.b32.xlu0 %v197, 85
        %v1033 = vpop.permute.xlu0 %1032
        %vm1034 = vcmask 695296
        %v1035 = vsel %vm1034, %v1029, %v1031
        %v1036 = vsel %vm1034, %v1031, %v1033
        %v1038 = vsel %vm207, %v1027, 0
        %v1041 = vsel %vm211, %v1035, 0
        %v1044 = vsel %vm211, %v1036, 0
        %v1047 = vsel %vm211, %v1033, 0
        %1049 = vmatpush.bf16.msra.mxu0 0
        %1050 = vmatpush.bf16.msra.mxu0 0
        %1051 = vmatpush.bf16.msra.mxu0 0
        %1052 = vmatpush.bf16.msra.mxu0 0
        %1053 = vmatpush.bf16.msra.mxu0 0
        %1054 = vmatpush.bf16.msra.mxu0 0
        %1055 = vmatpush.bf16.msra.mxu0 0
        %1056 = vmatpush.bf16.msra.mxu0 %v1041
        %1057 = vmatmul.bf16.gmra.mxu0 %v1038
        %v1058 = vpop.f32.mrf.mxu0
        %v1059 = vadd.f32 0.0, %v1058
        %v1060 = vpop.f32.mrf.mxu0
        %1061 = vdwg.mxu0
        %1062 = vmatpush.bf16.msra.mxu0 0
        %1063 = vmatpush.bf16.msra.mxu0 0
        %1064 = vmatpush.bf16.msra.mxu0 0
        %1065 = vmatpush.bf16.msra.mxu0 0
        %1066 = vmatpush.bf16.msra.mxu0 0
        %1067 = vmatpush.bf16.msra.mxu0 0
        %1068 = vmatpush.bf16.msra.mxu0 0
        %1069 = vmatpush.bf16.msra.mxu0 %v1044
        %1070 = vmatmul.bf16.gmra.mxu0 %v1038
        %v1071 = vpop.f32.mrf.mxu0
        %v1072 = vadd.f32 0.0, %v1071
        %v1073 = vpop.f32.mrf.mxu0
        %1074 = vdwg.mxu0
        %1075 = vmatpush.bf16.msra.mxu0 0
        %1076 = vmatpush.bf16.msra.mxu0 0
        %1077 = vmatpush.bf16.msra.mxu0 0
        %1078 = vmatpush.bf16.msra.mxu0 0
        %1079 = vmatpush.bf16.msra.mxu0 0
        %1080 = vmatpush.bf16.msra.mxu0 0
        %1081 = vmatpush.bf16.msra.mxu0 0
        %1082 = vmatpush.bf16.msra.mxu0 %v1047
        %1083 = vmatmul.bf16.gmra.mxu0 %v1038
        %v1084 = vpop.f32.mrf.mxu0
        %v1085 = vadd.f32 0.0, %v1084
        %v1086 = vpop.f32.mrf.mxu0
        %1087 = vdwg.mxu0
        %v1088 = vadd.f32 %v1023, %v1059
        %v1089 = vadd.f32 %v1024, %v1072
        %v1090 = vadd.f32 %v1025, %v1085
        %s1091 = scalar_lea.vmem %s1, 56
        %v1092 = vld [vmem:[%s1091] sm:$0xf]
        %1093 = vrot.lane.b32.xlu0 %v195, 84
        %v1094 = vpop.permute.xlu0 %1093
        %1095 = vrot.lane.b32.xlu0 %v196, 84
        %v1096 = vpop.permute.xlu0 %1095
        %1097 = vrot.lane.b32.xlu0 %v197, 84
        %v1098 = vpop.permute.xlu0 %1097
        %vm1099 = vcmask 687104
        %v1100 = vsel %vm1099, %v1094, %v1096
        %v1101 = vsel %vm1099, %v1096, %v1098
        %v1103 = vsel %vm207, %v1092, 0
        %v1106 = vsel %vm211, %v1100, 0
        %v1109 = vsel %vm211, %v1101, 0
        %v1112 = vsel %vm211, %v1098, 0
        %1114 = vmatpush.bf16.msra.mxu0 0
        %1115 = vmatpush.bf16.msra.mxu0 0
        %1116 = vmatpush.bf16.msra.mxu0 0
        %1117 = vmatpush.bf16.msra.mxu0 0
        %1118 = vmatpush.bf16.msra.mxu0 0
        %1119 = vmatpush.bf16.msra.mxu0 0
        %1120 = vmatpush.bf16.msra.mxu0 0
        %1121 = vmatpush.bf16.msra.mxu0 %v1106
        %1122 = vmatmul.bf16.gmra.mxu0 %v1103
        %v1123 = vpop.f32.mrf.mxu0
        %v1124 = vadd.f32 0.0, %v1123
        %v1125 = vpop.f32.mrf.mxu0
        %1126 = vdwg.mxu0
        %1127 = vmatpush.bf16.msra.mxu0 0
        %1128 = vmatpush.bf16.msra.mxu0 0
        %1129 = vmatpush.bf16.msra.mxu0 0
        %1130 = vmatpush.bf16.msra.mxu0 0
        %1131 = vmatpush.bf16.msra.mxu0 0
        %1132 = vmatpush.bf16.msra.mxu0 0
        %1133 = vmatpush.bf16.msra.mxu0 0
        %1134 = vmatpush.bf16.msra.mxu0 %v1109
        %1135 = vmatmul.bf16.gmra.mxu0 %v1103
        %v1136 = vpop.f32.mrf.mxu0
        %v1137 = vadd.f32 0.0, %v1136
        %v1138 = vpop.f32.mrf.mxu0
        %1139 = vdwg.mxu0
        %1140 = vmatpush.bf16.msra.mxu0 0
        %1141 = vmatpush.bf16.msra.mxu0 0
        %1142 = vmatpush.bf16.msra.mxu0 0
        %1143 = vmatpush.bf16.msra.mxu0 0
        %1144 = vmatpush.bf16.msra.mxu0 0
        %1145 = vmatpush.bf16.msra.mxu0 0
        %1146 = vmatpush.bf16.msra.mxu0 0
        %1147 = vmatpush.bf16.msra.mxu0 %v1112
        %1148 = vmatmul.bf16.gmra.mxu0 %v1103
        %v1149 = vpop.f32.mrf.mxu0
        %v1150 = vadd.f32 0.0, %v1149
        %v1151 = vpop.f32.mrf.mxu0
        %1152 = vdwg.mxu0
        %v1153 = vadd.f32 %v1088, %v1124
        %v1154 = vadd.f32 %v1089, %v1137
        %v1155 = vadd.f32 %v1090, %v1150
        %s1156 = scalar_lea.vmem %s1, 60
        %v1157 = vld [vmem:[%s1156] sm:$0xf]
        %1158 = vrot.lane.b32.xlu0 %v195, 68
        %v1159 = vpop.permute.xlu0 %1158
        %1160 = vrot.lane.b32.xlu0 %v196, 68
        %v1161 = vpop.permute.xlu0 %1160
        %1162 = vrot.lane.b32.xlu0 %v197, 68
        %v1163 = vpop.permute.xlu0 %1162
        %vm1164 = vcmask 556032
        %v1165 = vsel %vm1164, %v1159, %v1161
        %v1166 = vsel %vm1164, %v1161, %v1163
        %v1168 = vsel %vm207, %v1157, 0
        %v1171 = vsel %vm211, %v1165, 0
        %v1174 = vsel %vm211, %v1166, 0
        %v1177 = vsel %vm211, %v1163, 0
        %1179 = vmatpush.bf16.msra.mxu0 0
        %1180 = vmatpush.bf16.msra.mxu0 0
        %1181 = vmatpush.bf16.msra.mxu0 0
        %1182 = vmatpush.bf16.msra.mxu0 0
        %1183 = vmatpush.bf16.msra.mxu0 0
        %1184 = vmatpush.bf16.msra.mxu0 0
        %1185 = vmatpush.bf16.msra.mxu0 0
        %1186 = vmatpush.bf16.msra.mxu0 %v1171
        %1187 = vmatmul.bf16.gmra.mxu0 %v1168
        %v1188 = vpop.f32.mrf.mxu0
        %v1189 = vadd.f32 0.0, %v1188
        %v1190 = vpop.f32.mrf.mxu0
        %1191 = vdwg.mxu0
        %1192 = vmatpush.bf16.msra.mxu0 0
        %1193 = vmatpush.bf16.msra.mxu0 0
        %1194 = vmatpush.bf16.msra.mxu0 0
        %1195 = vmatpush.bf16.msra.mxu0 0
        %1196 = vmatpush.bf16.msra.mxu0 0
        %1197 = vmatpush.bf16.msra.mxu0 0
        %1198 = vmatpush.bf16.msra.mxu0 0
        %1199 = vmatpush.bf16.msra.mxu0 %v1174
        %1200 = vmatmul.bf16.gmra.mxu0 %v1168
        %v1201 = vpop.f32.mrf.mxu0
        %v1202 = vadd.f32 0.0, %v1201
        %v1203 = vpop.f32.mrf.mxu0
        %1204 = vdwg.mxu0
        %1205 = vmatpush.bf16.msra.mxu0 0
        %1206 = vmatpush.bf16.msra.mxu0 0
        %1207 = vmatpush.bf16.msra.mxu0 0
        %1208 = vmatpush.bf16.msra.mxu0 0
        %1209 = vmatpush.bf16.msra.mxu0 0
        %1210 = vmatpush.bf16.msra.mxu0 0
        %1211 = vmatpush.bf16.msra.mxu0 0
        %1212 = vmatpush.bf16.msra.mxu0 %v1177
        %1213 = vmatmul.bf16.gmra.mxu0 %v1168
        %v1214 = vpop.f32.mrf.mxu0
        %v1215 = vadd.f32 0.0, %v1214
        %v1216 = vpop.f32.mrf.mxu0
        %1217 = vdwg.mxu0
        %v1218 = vadd.f32 %v1153, %v1189
        %v1219 = vadd.f32 %v1154, %v1202
        %v1220 = vadd.f32 %v1155, %v1215
        %s1221 = scalar_lea.vmem %s1, 64
        %v1222 = vld [vmem:[%s1221] sm:$0xf]
        %1223 = vrot.lane.b32.xlu0 %v195, 67
        %v1224 = vpop.permute.xlu0 %1223
        %1225 = vrot.lane.b32.xlu0 %v196, 67
        %v1226 = vpop.permute.xlu0 %1225
        %1227 = vrot.lane.b32.xlu0 %v197, 67
        %v1228 = vpop.permute.xlu0 %1227
        %vm1229 = vcmask 547840
        %v1230 = vsel %vm1229, %v1224, %v1226
        %v1231 = vsel %vm1229, %v1226, %v1228
        %v1233 = vsel %vm207, %v1222, 0
        %v1236 = vsel %vm211, %v1230, 0
        %v1239 = vsel %vm211, %v1231, 0
        %v1242 = vsel %vm211, %v1228, 0
        %1244 = vmatpush.bf16.msra.mxu0 0
        %1245 = vmatpush.bf16.msra.mxu0 0
        %1246 = vmatpush.bf16.msra.mxu0 0
        %1247 = vmatpush.bf16.msra.mxu0 0
        %1248 = vmatpush.bf16.msra.mxu0 0
        %1249 = vmatpush.bf16.msra.mxu0 0
        %1250 = vmatpush.bf16.msra.mxu0 0
        %1251 = vmatpush.bf16.msra.mxu0 %v1236
        %1252 = vmatmul.bf16.gmra.mxu0 %v1233
        %v1253 = vpop.f32.mrf.mxu0
        %v1254 = vadd.f32 0.0, %v1253
        %v1255 = vpop.f32.mrf.mxu0
        %1256 = vdwg.mxu0
        %1257 = vmatpush.bf16.msra.mxu0 0
        %1258 = vmatpush.bf16.msra.mxu0 0
        %1259 = vmatpush.bf16.msra.mxu0 0
        %1260 = vmatpush.bf16.msra.mxu0 0
        %1261 = vmatpush.bf16.msra.mxu0 0
        %1262 = vmatpush.bf16.msra.mxu0 0
        %1263 = vmatpush.bf16.msra.mxu0 0
        %1264 = vmatpush.bf16.msra.mxu0 %v1239
        %1265 = vmatmul.bf16.gmra.mxu0 %v1233
        %v1266 = vpop.f32.mrf.mxu0
        %v1267 = vadd.f32 0.0, %v1266
        %v1268 = vpop.f32.mrf.mxu0
        %1269 = vdwg.mxu0
        %1270 = vmatpush.bf16.msra.mxu0 0
        %1271 = vmatpush.bf16.msra.mxu0 0
        %1272 = vmatpush.bf16.msra.mxu0 0
        %1273 = vmatpush.bf16.msra.mxu0 0
        %1274 = vmatpush.bf16.msra.mxu0 0
        %1275 = vmatpush.bf16.msra.mxu0 0
        %1276 = vmatpush.bf16.msra.mxu0 0
        %1277 = vmatpush.bf16.msra.mxu0 %v1242
        %1278 = vmatmul.bf16.gmra.mxu0 %v1233
        %v1279 = vpop.f32.mrf.mxu0
        %v1280 = vadd.f32 0.0, %v1279
        %v1281 = vpop.f32.mrf.mxu0
        %1282 = vdwg.mxu0
        %v1283 = vadd.f32 %v1218, %v1254
        %v1284 = vadd.f32 %v1219, %v1267
        %v1285 = vadd.f32 %v1220, %v1280
        %s1286 = scalar_lea.vmem %s1, 68
        %v1287 = vld [vmem:[%s1286] sm:$0xf]
        %1288 = vrot.lane.b32.xlu0 %v195, 66
        %v1289 = vpop.permute.xlu0 %1288
        %1290 = vrot.lane.b32.xlu0 %v196, 66
        %v1291 = vpop.permute.xlu0 %1290
        %1292 = vrot.lane.b32.xlu0 %v197, 66
        %v1293 = vpop.permute.xlu0 %1292
        %vm1294 = vcmask 539648
        %v1295 = vsel %vm1294, %v1289, %v1291
        %v1296 = vsel %vm1294, %v1291, %v1293
        %v1298 = vsel %vm207, %v1287, 0
        %v1301 = vsel %vm211, %v1295, 0
        %v1304 = vsel %vm211, %v1296, 0
        %v1307 = vsel %vm211, %v1293, 0
        %1309 = vmatpush.bf16.msra.mxu0 0
        %1310 = vmatpush.bf16.msra.mxu0 0
        %1311 = vmatpush.bf16.msra.mxu0 0
        %1312 = vmatpush.bf16.msra.mxu0 0
        %1313 = vmatpush.bf16.msra.mxu0 0
        %1314 = vmatpush.bf16.msra.mxu0 0
        %1315 = vmatpush.bf16.msra.mxu0 0
        %1316 = vmatpush.bf16.msra.mxu0 %v1301
        %1317 = vmatmul.bf16.gmra.mxu0 %v1298
        %v1318 = vpop.f32.mrf.mxu0
        %v1319 = vadd.f32 0.0, %v1318
        %v1320 = vpop.f32.mrf.mxu0
        %1321 = vdwg.mxu0
        %1322 = vmatpush.bf16.msra.mxu0 0
        %1323 = vmatpush.bf16.msra.mxu0 0
        %1324 = vmatpush.bf16.msra.mxu0 0
        %1325 = vmatpush.bf16.msra.mxu0 0
        %1326 = vmatpush.bf16.msra.mxu0 0
        %1327 = vmatpush.bf16.msra.mxu0 0
        %1328 = vmatpush.bf16.msra.mxu0 0
        %1329 = vmatpush.bf16.msra.mxu0 %v1304
        %1330 = vmatmul.bf16.gmra.mxu0 %v1298
        %v1331 = vpop.f32.mrf.mxu0
        %v1332 = vadd.f32 0.0, %v1331
        %v1333 = vpop.f32.mrf.mxu0
        %1334 = vdwg.mxu0
        %1335 = vmatpush.bf16.msra.mxu0 0
        %1336 = vmatpush.bf16.msra.mxu0 0
        %1337 = vmatpush.bf16.msra.mxu0 0
        %1338 = vmatpush.bf16.msra.mxu0 0
        %1339 = vmatpush.bf16.msra.mxu0 0
        %1340 = vmatpush.bf16.msra.mxu0 0
        %1341 = vmatpush.bf16.msra.mxu0 0
        %1342 = vmatpush.bf16.msra.mxu0 %v1307
        %1343 = vmatmul.bf16.gmra.mxu0 %v1298
        %v1344 = vpop.f32.mrf.mxu0
        %v1345 = vadd.f32 0.0, %v1344
        %v1346 = vpop.f32.mrf.mxu0
        %1347 = vdwg.mxu0
        %v1348 = vadd.f32 %v1283, %v1319
        %v1349 = vadd.f32 %v1284, %v1332
        %v1350 = vadd.f32 %v1285, %v1345
        %s1351 = scalar_lea.vmem %s1, 72
        %v1352 = vld [vmem:[%s1351] sm:$0xf]
        %1353 = vrot.lane.b32.xlu0 %v195, 65
        %v1354 = vpop.permute.xlu0 %1353
        %1355 = vrot.lane.b32.xlu0 %v196, 65
        %v1356 = vpop.permute.xlu0 %1355
        %1357 = vrot.lane.b32.xlu0 %v197, 65
        %v1358 = vpop.permute.xlu0 %1357
        %vm1359 = vcmask 531456
        %v1360 = vsel %vm1359, %v1354, %v1356
        %v1361 = vsel %vm1359, %v1356, %v1358
        %v1363 = vsel %vm207, %v1352, 0
        %v1366 = vsel %vm211, %v1360, 0
        %v1369 = vsel %vm211, %v1361, 0
        %v1372 = vsel %vm211, %v1358, 0
        %1374 = vmatpush.bf16.msra.mxu0 0
        %1375 = vmatpush.bf16.msra.mxu0 0
        %1376 = vmatpush.bf16.msra.mxu0 0
        %1377 = vmatpush.bf16.msra.mxu0 0
        %1378 = vmatpush.bf16.msra.mxu0 0
        %1379 = vmatpush.bf16.msra.mxu0 0
        %1380 = vmatpush.bf16.msra.mxu0 0
        %1381 = vmatpush.bf16.msra.mxu0 %v1366
        %1382 = vmatmul.bf16.gmra.mxu0 %v1363
        %v1383 = vpop.f32.mrf.mxu0
        %v1384 = vadd.f32 0.0, %v1383
        %v1385 = vpop.f32.mrf.mxu0
        %1386 = vdwg.mxu0
        %1387 = vmatpush.bf16.msra.mxu0 0
        %1388 = vmatpush.bf16.msra.mxu0 0
        %1389 = vmatpush.bf16.msra.mxu0 0
        %1390 = vmatpush.bf16.msra.mxu0 0
        %1391 = vmatpush.bf16.msra.mxu0 0
        %1392 = vmatpush.bf16.msra.mxu0 0
        %1393 = vmatpush.bf16.msra.mxu0 0
        %1394 = vmatpush.bf16.msra.mxu0 %v1369
        %1395 = vmatmul.bf16.gmra.mxu0 %v1363
        %v1396 = vpop.f32.mrf.mxu0
        %v1397 = vadd.f32 0.0, %v1396
        %v1398 = vpop.f32.mrf.mxu0
        %1399 = vdwg.mxu0
        %1400 = vmatpush.bf16.msra.mxu0 0
        %1401 = vmatpush.bf16.msra.mxu0 0
        %1402 = vmatpush.bf16.msra.mxu0 0
        %1403 = vmatpush.bf16.msra.mxu0 0
        %1404 = vmatpush.bf16.msra.mxu0 0
        %1405 = vmatpush.bf16.msra.mxu0 0
        %1406 = vmatpush.bf16.msra.mxu0 0
        %1407 = vmatpush.bf16.msra.mxu0 %v1372
        %1408 = vmatmul.bf16.gmra.mxu0 %v1363
        %v1409 = vpop.f32.mrf.mxu0
        %v1410 = vadd.f32 0.0, %v1409
        %v1411 = vpop.f32.mrf.mxu0
        %1412 = vdwg.mxu0
        %v1413 = vadd.f32 %v1348, %v1384
        %v1414 = vadd.f32 %v1349, %v1397
        %v1415 = vadd.f32 %v1350, %v1410
        %s1416 = scalar_lea.vmem %s1, 76
        %v1417 = vld [vmem:[%s1416] sm:$0xf]
        %1418 = vrot.lane.b32.xlu0 %v195, 64
        %v1419 = vpop.permute.xlu0 %1418
        %1420 = vrot.lane.b32.xlu0 %v196, 64
        %v1421 = vpop.permute.xlu0 %1420
        %1422 = vrot.lane.b32.xlu0 %v197, 64
        %v1423 = vpop.permute.xlu0 %1422
        %vm1424 = vcmask 523264
        %v1425 = vsel %vm1424, %v1419, %v1421
        %v1426 = vsel %vm1424, %v1421, %v1423
        %v1428 = vsel %vm207, %v1417, 0
        %v1431 = vsel %vm211, %v1425, 0
        %v1434 = vsel %vm211, %v1426, 0
        %v1437 = vsel %vm211, %v1423, 0
        %1439 = vmatpush.bf16.msra.mxu0 0
        %1440 = vmatpush.bf16.msra.mxu0 0
        %1441 = vmatpush.bf16.msra.mxu0 0
        %1442 = vmatpush.bf16.msra.mxu0 0
        %1443 = vmatpush.bf16.msra.mxu0 0
        %1444 = vmatpush.bf16.msra.mxu0 0
        %1445 = vmatpush.bf16.msra.mxu0 0
        %1446 = vmatpush.bf16.msra.mxu0 %v1431
        %1447 = vmatmul.bf16.gmra.mxu0 %v1428
        %v1448 = vpop.f32.mrf.mxu0
        %v1449 = vadd.f32 0.0, %v1448
        %v1450 = vpop.f32.mrf.mxu0
        %1451 = vdwg.mxu0
        %1452 = vmatpush.bf16.msra.mxu0 0
        %1453 = vmatpush.bf16.msra.mxu0 0
        %1454 = vmatpush.bf16.msra.mxu0 0
        %1455 = vmatpush.bf16.msra.mxu0 0
        %1456 = vmatpush.bf16.msra.mxu0 0
        %1457 = vmatpush.bf16.msra.mxu0 0
        %1458 = vmatpush.bf16.msra.mxu0 0
        %1459 = vmatpush.bf16.msra.mxu0 %v1434
        %1460 = vmatmul.bf16.gmra.mxu0 %v1428
        %v1461 = vpop.f32.mrf.mxu0
        %v1462 = vadd.f32 0.0, %v1461
        %v1463 = vpop.f32.mrf.mxu0
        %1464 = vdwg.mxu0
        %1465 = vmatpush.bf16.msra.mxu0 0
        %1466 = vmatpush.bf16.msra.mxu0 0
        %1467 = vmatpush.bf16.msra.mxu0 0
        %1468 = vmatpush.bf16.msra.mxu0 0
        %1469 = vmatpush.bf16.msra.mxu0 0
        %1470 = vmatpush.bf16.msra.mxu0 0
        %1471 = vmatpush.bf16.msra.mxu0 0
        %1472 = vmatpush.bf16.msra.mxu0 %v1437
        %1473 = vmatmul.bf16.gmra.mxu0 %v1428
        %v1474 = vpop.f32.mrf.mxu0
        %v1475 = vadd.f32 0.0, %v1474
        %v1476 = vpop.f32.mrf.mxu0
        %1477 = vdwg.mxu0
        %v1478 = vadd.f32 %v1413, %v1449
        %v1479 = vadd.f32 %v1414, %v1462
        %v1480 = vadd.f32 %v1415, %v1475
        %v1481 = vld [vmem:[%s182] sm:$0xff]
        %v1482 = vld [vmem:[%s182 + $0x8] sm:$0xff]
        %s1483 = scalar_lea.vmem %s1, 80
        %v1484 = vld [vmem:[%s1483] sm:$0xf]
        %v1487 = vunpack.c.l.b16 %v1481
        %v1488 = vunpack.c.h.b16 %v1481
        %v1489 = vunpack.c.l.b16 %v1482
        %v1490 = vunpack.c.h.b16 %v1482
        %v1491 = vpack.c.b16 %v1487, %v1487
        %v1492 = vpack.c.b16 %v1488, %v1488
        %v1493 = vpack.c.b16 %v1489, %v1489
        %v1494 = vpack.c.b16 %v1490, %v1490
        %1495 = vrot.lane.b32.xlu0 %v1491, 48
        %v1496 = vpop.permute.xlu0 %1495
        %1497 = vrot.lane.b32.xlu0 %v1492, 48
        %v1498 = vpop.permute.xlu0 %1497
        %1499 = vrot.lane.b32.xlu0 %v1493, 48
        %v1500 = vpop.permute.xlu0 %1499
        %1501 = vrot.lane.b32.xlu0 %v1494, 48
        %v1502 = vpop.permute.xlu0 %1501
        %vm1503 = vcmask 392192
        %v1504 = vsel %vm1503, %v1496, %v1498
        %v1505 = vsel %vm1503, %v1498, %v1500
        %v1506 = vsel %vm1503, %v1500, %v1502
        %v1508 = vsel %vm207, %v1484, 0
        %v1511 = vsel %vm211, %v1504, 0
        %v1514 = vsel %vm211, %v1505, 0
        %v1517 = vsel %vm211, %v1506, 0
        %1519 = vmatpush.bf16.msra.mxu0 0
        %1520 = vmatpush.bf16.msra.mxu0 0
        %1521 = vmatpush.bf16.msra.mxu0 0
        %1522 = vmatpush.bf16.msra.mxu0 0
        %1523 = vmatpush.bf16.msra.mxu0 0
        %1524 = vmatpush.bf16.msra.mxu0 0
        %1525 = vmatpush.bf16.msra.mxu0 0
        %1526 = vmatpush.bf16.msra.mxu0 %v1511
        %1527 = vmatmul.bf16.gmra.mxu0 %v1508
        %v1528 = vpop.f32.mrf.mxu0
        %v1529 = vadd.f32 0.0, %v1528
        %v1530 = vpop.f32.mrf.mxu0
        %1531 = vdwg.mxu0
        %1532 = vmatpush.bf16.msra.mxu0 0
        %1533 = vmatpush.bf16.msra.mxu0 0
        %1534 = vmatpush.bf16.msra.mxu0 0
        %1535 = vmatpush.bf16.msra.mxu0 0
        %1536 = vmatpush.bf16.msra.mxu0 0
        %1537 = vmatpush.bf16.msra.mxu0 0
        %1538 = vmatpush.bf16.msra.mxu0 0
        %1539 = vmatpush.bf16.msra.mxu0 %v1514
        %1540 = vmatmul.bf16.gmra.mxu0 %v1508
        %v1541 = vpop.f32.mrf.mxu0
        %v1542 = vadd.f32 0.0, %v1541
        %v1543 = vpop.f32.mrf.mxu0
        %1544 = vdwg.mxu0
        %1545 = vmatpush.bf16.msra.mxu0 0
        %1546 = vmatpush.bf16.msra.mxu0 0
        %1547 = vmatpush.bf16.msra.mxu0 0
        %1548 = vmatpush.bf16.msra.mxu0 0
        %1549 = vmatpush.bf16.msra.mxu0 0
        %1550 = vmatpush.bf16.msra.mxu0 0
        %1551 = vmatpush.bf16.msra.mxu0 0
        %1552 = vmatpush.bf16.msra.mxu0 %v1517
        %1553 = vmatmul.bf16.gmra.mxu0 %v1508
        %v1554 = vpop.f32.mrf.mxu0
        %v1555 = vadd.f32 0.0, %v1554
        %v1556 = vpop.f32.mrf.mxu0
        %1557 = vdwg.mxu0
        %v1558 = vadd.f32 %v1478, %v1529
        %v1559 = vadd.f32 %v1479, %v1542
        %v1560 = vadd.f32 %v1480, %v1555
        %s1561 = scalar_lea.vmem %s1, 84
        %v1562 = vld [vmem:[%s1561] sm:$0xf]
        %1563 = vrot.lane.b32.xlu0 %v1491, 47
        %v1564 = vpop.permute.xlu0 %1563
        %1565 = vrot.lane.b32.xlu0 %v1492, 47
        %v1566 = vpop.permute.xlu0 %1565
        %1567 = vrot.lane.b32.xlu0 %v1493, 47
        %v1568 = vpop.permute.xlu0 %1567
        %1569 = vrot.lane.b32.xlu0 %v1494, 47
        %v1570 = vpop.permute.xlu0 %1569
        %vm1571 = vcmask 384000
        %v1572 = vsel %vm1571, %v1564, %v1566
        %v1573 = vsel %vm1571, %v1566, %v1568
        %v1574 = vsel %vm1571, %v1568, %v1570
        %v1576 = vsel %vm207, %v1562, 0
        %v1579 = vsel %vm211, %v1572, 0
        %v1582 = vsel %vm211, %v1573, 0
        %v1585 = vsel %vm211, %v1574, 0
        %1587 = vmatpush.bf16.msra.mxu0 0
        %1588 = vmatpush.bf16.msra.mxu0 0
        %1589 = vmatpush.bf16.msra.mxu0 0
        %1590 = vmatpush.bf16.msra.mxu0 0
        %1591 = vmatpush.bf16.msra.mxu0 0
        %1592 = vmatpush.bf16.msra.mxu0 0
        %1593 = vmatpush.bf16.msra.mxu0 0
        %1594 = vmatpush.bf16.msra.mxu0 %v1579
        %1595 = vmatmul.bf16.gmra.mxu0 %v1576
        %v1596 = vpop.f32.mrf.mxu0
        %v1597 = vadd.f32 0.0, %v1596
        %v1598 = vpop.f32.mrf.mxu0
        %1599 = vdwg.mxu0
        %1600 = vmatpush.bf16.msra.mxu0 0
        %1601 = vmatpush.bf16.msra.mxu0 0
        %1602 = vmatpush.bf16.msra.mxu0 0
        %1603 = vmatpush.bf16.msra.mxu0 0
        %1604 = vmatpush.bf16.msra.mxu0 0
        %1605 = vmatpush.bf16.msra.mxu0 0
        %1606 = vmatpush.bf16.msra.mxu0 0
        %1607 = vmatpush.bf16.msra.mxu0 %v1582
        %1608 = vmatmul.bf16.gmra.mxu0 %v1576
        %v1609 = vpop.f32.mrf.mxu0
        %v1610 = vadd.f32 0.0, %v1609
        %v1611 = vpop.f32.mrf.mxu0
        %1612 = vdwg.mxu0
        %1613 = vmatpush.bf16.msra.mxu0 0
        %1614 = vmatpush.bf16.msra.mxu0 0
        %1615 = vmatpush.bf16.msra.mxu0 0
        %1616 = vmatpush.bf16.msra.mxu0 0
        %1617 = vmatpush.bf16.msra.mxu0 0
        %1618 = vmatpush.bf16.msra.mxu0 0
        %1619 = vmatpush.bf16.msra.mxu0 0
        %1620 = vmatpush.bf16.msra.mxu0 %v1585
        %1621 = vmatmul.bf16.gmra.mxu0 %v1576
        %v1622 = vpop.f32.mrf.mxu0
        %v1623 = vadd.f32 0.0, %v1622
        %v1624 = vpop.f32.mrf.mxu0
        %1625 = vdwg.mxu0
        %v1626 = vadd.f32 %v1558, %v1597
        %v1627 = vadd.f32 %v1559, %v1610
        %v1628 = vadd.f32 %v1560, %v1623
        %s1629 = scalar_lea.vmem %s1, 88
        %v1630 = vld [vmem:[%s1629] sm:$0xf]
        %1631 = vrot.lane.b32.xlu0 %v1491, 46
        %v1632 = vpop.permute.xlu0 %1631
        %1633 = vrot.lane.b32.xlu0 %v1492, 46
        %v1634 = vpop.permute.xlu0 %1633
        %1635 = vrot.lane.b32.xlu0 %v1493, 46
        %v1636 = vpop.permute.xlu0 %1635
        %1637 = vrot.lane.b32.xlu0 %v1494, 46
        %v1638 = vpop.permute.xlu0 %1637
        %vm1639 = vcmask 375808
        %v1640 = vsel %vm1639, %v1632, %v1634
        %v1641 = vsel %vm1639, %v1634, %v1636
        %v1642 = vsel %vm1639, %v1636, %v1638
        %v1644 = vsel %vm207, %v1630, 0
        %v1647 = vsel %vm211, %v1640, 0
        %v1650 = vsel %vm211, %v1641, 0
        %v1653 = vsel %vm211, %v1642, 0
        %1655 = vmatpush.bf16.msra.mxu0 0
        %1656 = vmatpush.bf16.msra.mxu0 0
        %1657 = vmatpush.bf16.msra.mxu0 0
        %1658 = vmatpush.bf16.msra.mxu0 0
        %1659 = vmatpush.bf16.msra.mxu0 0
        %1660 = vmatpush.bf16.msra.mxu0 0
        %1661 = vmatpush.bf16.msra.mxu0 0
        %1662 = vmatpush.bf16.msra.mxu0 %v1647
        %1663 = vmatmul.bf16.gmra.mxu0 %v1644
        %v1664 = vpop.f32.mrf.mxu0
        %v1665 = vadd.f32 0.0, %v1664
        %v1666 = vpop.f32.mrf.mxu0
        %1667 = vdwg.mxu0
        %1668 = vmatpush.bf16.msra.mxu0 0
        %1669 = vmatpush.bf16.msra.mxu0 0
        %1670 = vmatpush.bf16.msra.mxu0 0
        %1671 = vmatpush.bf16.msra.mxu0 0
        %1672 = vmatpush.bf16.msra.mxu0 0
        %1673 = vmatpush.bf16.msra.mxu0 0
        %1674 = vmatpush.bf16.msra.mxu0 0
        %1675 = vmatpush.bf16.msra.mxu0 %v1650
        %1676 = vmatmul.bf16.gmra.mxu0 %v1644
        %v1677 = vpop.f32.mrf.mxu0
        %v1678 = vadd.f32 0.0, %v1677
        %v1679 = vpop.f32.mrf.mxu0
        %1680 = vdwg.mxu0
        %1681 = vmatpush.bf16.msra.mxu0 0
        %1682 = vmatpush.bf16.msra.mxu0 0
        %1683 = vmatpush.bf16.msra.mxu0 0
        %1684 = vmatpush.bf16.msra.mxu0 0
        %1685 = vmatpush.bf16.msra.mxu0 0
        %1686 = vmatpush.bf16.msra.mxu0 0
        %1687 = vmatpush.bf16.msra.mxu0 0
        %1688 = vmatpush.bf16.msra.mxu0 %v1653
        %1689 = vmatmul.bf16.gmra.mxu0 %v1644
        %v1690 = vpop.f32.mrf.mxu0
        %v1691 = vadd.f32 0.0, %v1690
        %v1692 = vpop.f32.mrf.mxu0
        %1693 = vdwg.mxu0
        %v1694 = vadd.f32 %v1626, %v1665
        %v1695 = vadd.f32 %v1627, %v1678
        %v1696 = vadd.f32 %v1628, %v1691
        %s1697 = scalar_lea.vmem %s1, 92
        %v1698 = vld [vmem:[%s1697] sm:$0xf]
        %1699 = vrot.lane.b32.xlu0 %v1491, 45
        %v1700 = vpop.permute.xlu0 %1699
        %1701 = vrot.lane.b32.xlu0 %v1492, 45
        %v1702 = vpop.permute.xlu0 %1701
        %1703 = vrot.lane.b32.xlu0 %v1493, 45
        %v1704 = vpop.permute.xlu0 %1703
        %1705 = vrot.lane.b32.xlu0 %v1494, 45
        %v1706 = vpop.permute.xlu0 %1705
        %vm1707 = vcmask 367616
        %v1708 = vsel %vm1707, %v1700, %v1702
        %v1709 = vsel %vm1707, %v1702, %v1704
        %v1710 = vsel %vm1707, %v1704, %v1706
        %v1712 = vsel %vm207, %v1698, 0
        %v1715 = vsel %vm211, %v1708, 0
        %v1718 = vsel %vm211, %v1709, 0
        %v1721 = vsel %vm211, %v1710, 0
        %1723 = vmatpush.bf16.msra.mxu0 0
        %1724 = vmatpush.bf16.msra.mxu0 0
        %1725 = vmatpush.bf16.msra.mxu0 0
        %1726 = vmatpush.bf16.msra.mxu0 0
        %1727 = vmatpush.bf16.msra.mxu0 0
        %1728 = vmatpush.bf16.msra.mxu0 0
        %1729 = vmatpush.bf16.msra.mxu0 0
        %1730 = vmatpush.bf16.msra.mxu0 %v1715
        %1731 = vmatmul.bf16.gmra.mxu0 %v1712
        %v1732 = vpop.f32.mrf.mxu0
        %v1733 = vadd.f32 0.0, %v1732
        %v1734 = vpop.f32.mrf.mxu0
        %1735 = vdwg.mxu0
        %1736 = vmatpush.bf16.msra.mxu0 0
        %1737 = vmatpush.bf16.msra.mxu0 0
        %1738 = vmatpush.bf16.msra.mxu0 0
        %1739 = vmatpush.bf16.msra.mxu0 0
        %1740 = vmatpush.bf16.msra.mxu0 0
        %1741 = vmatpush.bf16.msra.mxu0 0
        %1742 = vmatpush.bf16.msra.mxu0 0
        %1743 = vmatpush.bf16.msra.mxu0 %v1718
        %1744 = vmatmul.bf16.gmra.mxu0 %v1712
        %v1745 = vpop.f32.mrf.mxu0
        %v1746 = vadd.f32 0.0, %v1745
        %v1747 = vpop.f32.mrf.mxu0
        %1748 = vdwg.mxu0
        %1749 = vmatpush.bf16.msra.mxu0 0
        %1750 = vmatpush.bf16.msra.mxu0 0
        %1751 = vmatpush.bf16.msra.mxu0 0
        %1752 = vmatpush.bf16.msra.mxu0 0
        %1753 = vmatpush.bf16.msra.mxu0 0
        %1754 = vmatpush.bf16.msra.mxu0 0
        %1755 = vmatpush.bf16.msra.mxu0 0
        %1756 = vmatpush.bf16.msra.mxu0 %v1721
        %1757 = vmatmul.bf16.gmra.mxu0 %v1712
        %v1758 = vpop.f32.mrf.mxu0
        %v1759 = vadd.f32 0.0, %v1758
        %v1760 = vpop.f32.mrf.mxu0
        %1761 = vdwg.mxu0
        %v1762 = vadd.f32 %v1694, %v1733
        %v1763 = vadd.f32 %v1695, %v1746
        %v1764 = vadd.f32 %v1696, %v1759
        %s1765 = scalar_lea.vmem %s1, 96
        %v1766 = vld [vmem:[%s1765] sm:$0xf]
        %1767 = vrot.lane.b32.xlu0 %v1491, 44
        %v1768 = vpop.permute.xlu0 %1767
        %1769 = vrot.lane.b32.xlu0 %v1492, 44
        %v1770 = vpop.permute.xlu0 %1769
        %1771 = vrot.lane.b32.xlu0 %v1493, 44
        %v1772 = vpop.permute.xlu0 %1771
        %1773 = vrot.lane.b32.xlu0 %v1494, 44
        %v1774 = vpop.permute.xlu0 %1773
        %vm1775 = vcmask 359424
        %v1776 = vsel %vm1775, %v1768, %v1770
        %v1777 = vsel %vm1775, %v1770, %v1772
        %v1778 = vsel %vm1775, %v1772, %v1774
        %v1780 = vsel %vm207, %v1766, 0
        %v1783 = vsel %vm211, %v1776, 0
        %v1786 = vsel %vm211, %v1777, 0
        %v1789 = vsel %vm211, %v1778, 0
        %1791 = vmatpush.bf16.msra.mxu0 0
        %1792 = vmatpush.bf16.msra.mxu0 0
        %1793 = vmatpush.bf16.msra.mxu0 0
        %1794 = vmatpush.bf16.msra.mxu0 0
        %1795 = vmatpush.bf16.msra.mxu0 0
        %1796 = vmatpush.bf16.msra.mxu0 0
        %1797 = vmatpush.bf16.msra.mxu0 0
        %1798 = vmatpush.bf16.msra.mxu0 %v1783
        %1799 = vmatmul.bf16.gmra.mxu0 %v1780
        %v1800 = vpop.f32.mrf.mxu0
        %v1801 = vadd.f32 0.0, %v1800
        %v1802 = vpop.f32.mrf.mxu0
        %1803 = vdwg.mxu0
        %1804 = vmatpush.bf16.msra.mxu0 0
        %1805 = vmatpush.bf16.msra.mxu0 0
        %1806 = vmatpush.bf16.msra.mxu0 0
        %1807 = vmatpush.bf16.msra.mxu0 0
        %1808 = vmatpush.bf16.msra.mxu0 0
        %1809 = vmatpush.bf16.msra.mxu0 0
        %1810 = vmatpush.bf16.msra.mxu0 0
        %1811 = vmatpush.bf16.msra.mxu0 %v1786
        %1812 = vmatmul.bf16.gmra.mxu0 %v1780
        %v1813 = vpop.f32.mrf.mxu0
        %v1814 = vadd.f32 0.0, %v1813
        %v1815 = vpop.f32.mrf.mxu0
        %1816 = vdwg.mxu0
        %1817 = vmatpush.bf16.msra.mxu0 0
        %1818 = vmatpush.bf16.msra.mxu0 0
        %1819 = vmatpush.bf16.msra.mxu0 0
        %1820 = vmatpush.bf16.msra.mxu0 0
        %1821 = vmatpush.bf16.msra.mxu0 0
        %1822 = vmatpush.bf16.msra.mxu0 0
        %1823 = vmatpush.bf16.msra.mxu0 0
        %1824 = vmatpush.bf16.msra.mxu0 %v1789
        %1825 = vmatmul.bf16.gmra.mxu0 %v1780
        %v1826 = vpop.f32.mrf.mxu0
        %v1827 = vadd.f32 0.0, %v1826
        %v1828 = vpop.f32.mrf.mxu0
        %1829 = vdwg.mxu0
        %v1830 = vadd.f32 %v1762, %v1801
        %v1831 = vadd.f32 %v1763, %v1814
        %v1832 = vadd.f32 %v1764, %v1827
        %v1833 = vld [vmem:[%s2] sm:$0xff]
        %1835 = vset.pattern.permute.xlu0 0
        %1836 = vperm.xlu0 %1835, %v1833
        %v1837 = vpop.permute.xlu0 %1836
        %v1839 = vadd.f32 %v1830, %v1837
        %v1840 = vadd.f32 %v1831, %v1837
        %v1841 = vadd.f32 %v1832, %v1837
        %vm1842 = vcmp.ge.f32.partialorder %v1839, 0.0
        %vm1843 = vcmp.ge.f32.partialorder %v1840, 0.0
        %vm1844 = vcmp.ge.f32.partialorder %v1841, 0.0
        %v1845 = vmul.f32 %v1839, 0.1
        %v1846 = vmul.f32 %v1840, 0.1
        %v1847 = vmul.f32 %v1841, 0.1
        %v1848 = vsel %vm1842, %v1839, %v1845
        %v1849 = vsel %vm1843, %v1840, %v1846
        %v1850 = vsel %vm1844, %v1841, %v1847
        %1851 = vset.pattern.permute.xlu0 1
        %1852 = vperm.xlu0 %1851, %v1833
        %v1853 = vpop.permute.xlu0 %1852
        %v1855 = vmul.f32 %v1848, %v1853
        %v1856 = vmul.f32 %v1849, %v1853
        %v1857 = vmul.f32 %v1850, %v1853
        %1858 = vset.pattern.permute.xlu0 2
        %1859 = vperm.xlu0 %1858, %v1833
        %v1860 = vpop.permute.xlu0 %1859
        %v1862 = vadd.f32 %v1855, %v1860
        %v1863 = vadd.f32 %v1856, %v1860
        %v1864 = vadd.f32 %v1857, %v1860
        %1865 = vst [vmem:[%s177] sm:$0xff] %v1862
        %1866 = vst [vmem:[%s177 + $0x8] sm:$0xff] %v1863
        %vm1867 = vcmask 523264
        %1868 = vst.msk [vmem:[%s177 + $0x10] sm:$0xff] %vm1867, %v1864
        %s1869 = sand.u32 %s107, 1
        %s1870 = scalar_lea.sflag [#allocation3], %s1869
        %s1871 = sand.u32 %s107, 1
        %s1872 = smul.addr %s1871, 24
        %s1873 = scalar_lea.vmem [#allocation2], %s1872
        // Predicated region
        $region33: #{tpu_custom_call.1} parent=31 // pred_check
          %p1874 = pneg %p117
        $region34: #{tpu_custom_call.1} parent=31 // pred_check_branch
          %1876 = sbr.rel (%p1874) target = $region36
        $region35: #{tpu_custom_call.1} parent=31 // pred_region
          %s1877 = smul.u32 3, %s22
          %1879 = vsyncadd %s1870, 0
          %s1880 = smul.addr %s21, 3
          %s1881 = sadd.s32 %s1877, %s1880
          %s1882 = smul.addr %s1881, 8
          %s1883 = scalar_lea.hbm %s3, %s1882
          %s1885 = sshll.u32 %s1873, 4
          %s1886 = int_to_ptr.vmem [resolvable:$true] %s1885
          %s1887 = sshll.u32 %s1883, 4
          %s1888 = int_to_ptr.hbm [resolvable:$true] %s1887
          %1890 = dma.vmem_to_hbm [thread:$0]  %s1886, 384, %s1888, %s1870
        $region36: #{tpu_custom_call.1} parent=31 // pred_fallthru
          _
      $region32: #{tpu_custom_call.1} parent=5 // pred_fallthru
        _
      %p1891 = scmp.le.s32.totalorder 2, %s12
      // Predicated region
      $region37: #{tpu_custom_call.1} parent=5 // pred_check
        %p1892 = pneg %p1891
      $region38: #{tpu_custom_call.1} parent=5 // pred_check_branch
        %1894 = sbr.rel (%p1892) target = $region40
      $region39: #{tpu_custom_call.1} parent=5 // pred_region
        %s1895 = ssub.s32 %s12, 2
        // Predicated region
        $region41: #{tpu_custom_call.1} parent=39 // pred_check
          %p1896 = pneg %p123
        $region42: #{tpu_custom_call.1} parent=39 // pred_check_branch
          %1898 = sbr.rel (%p1896) target = $region44
        $region43: #{tpu_custom_call.1} parent=39 // pred_region
          %s1899 = sand.u32 %s108, 1
          %s1900 = scalar_lea.sflag [#allocation3], %s1899
          %s1901 = sand.u32 %s108, 1
          %s1902 = smul.addr %s1901, 24
          %s1903 = scalar_lea.vmem [#allocation2], %s1902
          %1905 = dma.done %s1900, 384
        $region44: #{tpu_custom_call.1} parent=39 // pred_fallthru
          _
      $region40: #{tpu_custom_call.1} parent=5 // pred_fallthru
        _
    $region6: #{tpu_custom_call.1} parent=1 // loop_footer
      %s16 = sadd.s32 1, %s12
    $region7: #{tpu_custom_call.1} parent=1 // loop_footer_branch
      %11 = sbr.rel target = $region3
    $region8: #{tpu_custom_call.1} parent=1 // loop_exit
      _
    %1906 = vsyncpa [#allocation3], 1
    %s1907 = scalar_lea.sflag [#allocation3], 1
    %1908 = vsyncpa %s1907, 1

</llo_original>
